<compile_context>
chip_gen: v7x
topology: tpu7x:2x2x1
jax: 0.10.0
libtpu: 0.0.40
codegen_flags: <defaults>
</compile_context>

<pallas_src>
import math
import jax
import jax.numpy as jnp
from jax import lax
from jax.experimental import pallas as pl
from jax.experimental.pallas import tpu as pltpu

LN_EPS = 1e-5                    # nn.LayerNorm default
INV_SQRT2 = 0.7071067811865476
MASK_BIG = 9e15                  # matches torch's -9e15 masking magnitude


# ----------------------------------------------------------------------------
# Device-dependent knobs
# ----------------------------------------------------------------------------
def _softmax_dtype():
    """bf16 softmax tail on chips with bf16 VPU/EUP (v6e/v7x); f32 elsewhere."""
    try:
        kind = jax.devices()[0].device_kind.lower()
    except Exception:
        return jnp.float32
    if ("v6" in kind) or ("v7" in kind) or ("7x" in kind):
        return jnp.bfloat16
    return jnp.float32


def _vmem_limit_bytes(N, Fin, HF, out_pad):
    est = (2 * N * N * 1           # double-buffered int8 adjacency
           + 2 * N * Fin * 2       # double-buffered bf16 x
           + 2 * N * out_pad * 4   # double-buffered f32 output
           + 6 * N * N * 4         # in-flight (N,N) f32 temporaries
           + 8 * N * HF * 4)       # Wh / slab / LN intermediates
    try:
        cap = int(pltpu.get_tpu_info().vmem_capacity_bytes)
    except Exception:
        cap = 64 * 1024 * 1024     # conservative fallback (v7x per-core VMEM)
    cap_lim = min(int(0.8 * cap), 100 * 1024 * 1024)
    return int(min(max(2 * est, 32 * 1024 * 1024), cap_lim))


# ----------------------------------------------------------------------------
# Fused Pallas kernel
# ----------------------------------------------------------------------------
def make_gat_kernel(alpha, nheads, fh, nclass, out_pad, sm_dtype):
    alpha = float(alpha)
    H, Fh = int(nheads), int(fh)
    HF = H * Fh

    def attend(e, bias, v_b, v_res):
        """softmax(LeakyReLU(e) + bias) @ v + v  (masked attention + residual)."""
        e = jnp.maximum(e, alpha * e)                       # LeakyReLU (alpha<1)
        logits = e + bias                                   # additive mask bias
        m = jnp.max(logits, axis=-1, keepdims=True)
        p = jnp.exp((logits - m).astype(sm_dtype))          # bf16 tail on v6e/v7x
        s = jnp.sum(p.astype(jnp.float32), axis=-1, keepdims=True)
        inv = pl.reciprocal(s, approx=True)                 # EUP slot, ~free
        attn = p * inv.astype(sm_dtype)
        # dropout on attn skipped (eval mode)
        hp = jnp.dot(attn.astype(jnp.bfloat16), v_b,
                     preferred_element_type=jnp.float32)
        return hp + v_res

    def kernel(h_ref, adj_ref, wall_ref, a1blk_ref, a2blk_ref, seg_ref, segt_ref,
               gh_ref, bh_ref, ng_ref, nb_ref, wo_ref, a1o_ref, a2o_ref,
               go_ref, bo_ref, out_ref, xslab_ref):
        hb = h_ref[0]                                       # (N, Fin) bf16
        N = hb.shape[0]

        # additive attention-mask bias, built ONCE, reused for all H+1 passes
        bias = (adj_ref[0].astype(jnp.float32) - 1.0) * MASK_BIG   # 0 / -9e15
        # NOTE: rows with zero neighbors get a plain softmax over e (no NaN),
        # which differs from torch's uniform softmax for fully-masked rows;
        # irrelevant when the graph has self-loops (as in standard GAT usage).

        # ---- stacked-head projection: one lane-dense MXU matmul -------------
        Wh = jnp.dot(hb, wall_ref[...],
                     preferred_element_type=jnp.float32)    # (N, HF) f32
        Wh_b = Wh.astype(jnp.bfloat16)

        # ---- rank-1 logit pieces, batched across heads (2 small matmuls) ----
        e1_all = jnp.dot(Wh_b, a1blk_ref[...],
                         preferred_element_type=jnp.float32)          # (N, H)
        e2_all = lax.dot_general(a2blk_ref[...], Wh_b,
                                 (((1,), (1,)), ((), ())),
                                 preferred_element_type=jnp.float32)  # (H, N)

        # ---- per-head attention + residual into one contiguous slab ---------
        # TODO(synk): switch this head loop to lax.fori_loop if nheads > ~4.
        for hd in range(H):
            lo = hd * Fh
            e = e1_all[:, hd:hd + 1] + e2_all[hd:hd + 1, :]           # (N, N)
            xslab_ref[:, lo:lo + Fh] = attend(
                e, bias, Wh_b[:, lo:lo + Fh], Wh[:, lo:lo + Fh])

        X = xslab_ref[...]                                            # (N, HF)

        # ---- per-head LayerNorm + ELU (lane-dense via segment matmuls) ------
        inv_fh = jnp.float32(1.0 / Fh)
        mu_h = jnp.dot(X, seg_ref[...],
                       preferred_element_type=jnp.float32) * inv_fh   # (N, H)
        mu_f = jnp.dot(mu_h, segt_ref[...],
                       preferred_element_type=jnp.float32)            # (N, HF)
        D = X - mu_f
        var_h = jnp.dot(D * D, seg_ref[...],
                        preferred_element_type=jnp.float32) * inv_fh  # (N, H)
        istd_f = jnp.dot(lax.rsqrt(var_h + LN_EPS), segt_ref[...],
                         preferred_element_type=jnp.float32)          # (N, HF)
        Xn = D * istd_f * gh_ref[...] + bh_ref[...]
        Xe = jnp.where(Xn > 0, Xn, jnp.exp(Xn) - 1.0)                 # ELU

        # ---- inter-head LayerNorm over the (virtual) H*Fh concat ------------
        mu_c = jnp.mean(Xe, axis=-1, keepdims=True)
        Dc = Xe - mu_c
        var_c = jnp.mean(Dc * Dc, axis=-1, keepdims=True)
        Xc = Dc * lax.rsqrt(var_c + LN_EPS) * ng_ref[...] + nb_ref[...]
        # dropout skipped (eval mode)

        # ---- output projection + output attention layer (concat=False) ------
        Who = jnp.dot(Xc.astype(jnp.bfloat16), wo_ref[...],
                      preferred_element_type=jnp.float32)             # (N, C)
        Who_b = Who.astype(jnp.bfloat16)
        e1o = jnp.sum(Who * a1o_ref[...], axis=-1, keepdims=True)     # (N, 1)
        e2o = lax.dot_general(a2o_ref[...], Who, (((1,), (1,)), ((), ())),
                              preferred_element_type=jnp.float32)     # (1, N)
        xo = attend(e1o + e2o, bias, Who_b, Who)

        # final LayerNorm(nclass) + exact (erf) GELU
        mu = jnp.mean(xo, axis=-1, keepdims=True)
        d = xo - mu
        var = jnp.mean(d * d, axis=-1, keepdims=True)
        xo = d * lax.rsqrt(var + LN_EPS) * go_ref[...] + bo_ref[...]
        xo = 0.5 * xo * (1.0 + lax.erf(xo * INV_SQRT2))

        # lane-dense store: pad class axis to out_pad (multiple of 128 lanes)
        if out_pad > nclass:
            pad = jnp.zeros((N, out_pad - nclass), jnp.float32)
            out_ref[0] = jnp.concatenate([xo, pad], axis=-1)
        else:
            out_ref[0] = xo

    return kernel


# ----------------------------------------------------------------------------
# Wrapper
# ----------------------------------------------------------------------------
def gat_forward(x, adj, params, *, alpha):
    # F.dropout on x skipped (eval-mode identity)
    B, N, Fin = x.shape
    H, Fh = params["a1_all"].shape
    HF = H * Fh
    nclass = params["Wo"].shape[1]
    OUT_PAD = max(128, ((nclass + 127) // 128) * 128)

    f32 = jnp.float32
    # x only ever feeds the MXU -> ship bf16 (callers should cast upstream).
    xb = x if x.dtype == jnp.bfloat16 else x.astype(jnp.bfloat16)
    # adjacency should arrive as int8/bool 0-1 (dominant HBM stream); cast is
    # only a fallback for float callers.
    adj8 = adj if adj.dtype == jnp.int8 else (adj > 0).astype(jnp.int8)

    W_all = params["W_all"].astype(jnp.bfloat16)
    Wo = params["Wo"].astype(jnp.bfloat16)

    # Block-structured attention vectors so e1/e2 for ALL heads come from two
    # lane-dense matmuls inside the kernel.
    a1_all = params["a1_all"].astype(f32)                     # (H, Fh)
    a2_all = params["a2_all"].astype(f32)
    a1blk = (jnp.zeros((H, Fh, H), f32)
             .at[jnp.arange(H), :, jnp.arange(H)].set(a1_all)
             .reshape(HF, H).astype(jnp.bfloat16))            # (HF, H)
    a2blk = (jnp.zeros((H, H, Fh), f32)
             .at[jnp.arange(H), jnp.arange(H), :].set(a2_all)
             .reshape(H, HF).astype(jnp.bfloat16))            # (H, HF)
    # Head segment-indicator (lane-dense per-head LN statistics).
    seg = jnp.repeat(jnp.eye(H, dtype=f32), Fh, axis=0)       # (HF, H)
    segt = seg.T                                              # (H, HF)

    gh = params["gamma_heads"].reshape(1, HF).astype(f32)
    bh = params["beta_heads"].reshape(1, HF).astype(f32)

    kernel = make_gat_kernel(alpha, H, Fh, nclass, OUT_PAD, _softmax_dtype())
    const = lambda shape: pl.BlockSpec(shape, lambda b: (0, 0))

    out = pl.pallas_call(
        kernel,
        out_shape=jax.ShapeDtypeStruct((B, N, OUT_PAD), jnp.float32),
        grid=(B,),
        in_specs=[
            pl.BlockSpec((1, N, Fin), lambda b: (b, 0, 0)),   # x (bf16)
            pl.BlockSpec((1, N, N), lambda b: (b, 0, 0)),     # adj (int8)
            const((Fin, HF)),                                 # W_all (bf16)
            const((HF, H)),                                   # a1 block (bf16)
            const((H, HF)),                                   # a2 block (bf16)
            const((HF, H)),                                   # seg indicator
            const((H, HF)),                                   # seg indicator^T
            const((1, HF)),                                   # per-head LN gamma
            const((1, HF)),                                   # per-head LN beta
            const((1, HF)),                                   # inter-head LN gamma
            const((1, HF)),                                   # inter-head LN beta
            const((HF, nclass)),                              # Wo (bf16)
            const((1, nclass)),                               # a1 out
            const((1, nclass)),                               # a2 out
            const((1, nclass)),                               # out LN gamma
            const((1, nclass)),                               # out LN beta
        ],
        out_specs=pl.BlockSpec((1, N, OUT_PAD), lambda b: (b, 0, 0)),
        scratch_shapes=[pltpu.VMEM((N, HF), jnp.float32)],    # head-output slab
        compiler_params=pltpu.CompilerParams(
            dimension_semantics=("parallel",),
            vmem_limit_bytes=_vmem_limit_bytes(N, Fin, HF, OUT_PAD)),
    )(xb, adj8, W_all, a1blk, a2blk, seg, segt, gh, bh,
      params["norm_gamma"], params["norm_beta"],
      Wo, params["a1o"], params["a2o"],
      params["gamma_o"], params["beta_o"])

    return out[..., :nclass]


# ----------------------------------------------------------------------------
# Parameter init (xavier_uniform with gain=1.414, like the PyTorch module)
# ----------------------------------------------------------------------------
def xavier_uniform(key, shape, fan_in, fan_out, gain=1.414):
    bound = gain * math.sqrt(6.0 / (fan_in + fan_out))
    return jax.random.uniform(key, shape, jnp.float32, minval=-bound, maxval=bound)


def init_gat_params(key, nfeat, nhid, nclass, nheads):
    Ws, a1s, a2s = [], [], []
    for _ in range(nheads):
        key, kw, ka = jax.random.split(key, 3)
        Ws.append(xavier_uniform(kw, (nfeat, nhid), nfeat, nhid))
        a = xavier_uniform(ka, (2, nhid), 1, 2 * nhid)   # rows: [a1; a2]
        a1s.append(a[0])
        a2s.append(a[1])
    params = {
        "W_all": jnp.concatenate(Ws, axis=1),                       # (Fin, H*Fh)
        "a1_all": jnp.stack(a1s),                                   # (H, Fh)
        "a2_all": jnp.stack(a2s),                                   # (H, Fh)
        "gamma_heads": jnp.ones((nheads, nhid), jnp.float32),
        "beta_heads": jnp.zeros((nheads, nhid), jnp.float32),
        "norm_gamma": jnp.ones((1, nhid * nheads), jnp.float32),
        "norm_beta": jnp.zeros((1, nhid * nheads), jnp.float32),
    }
    key, kw, ka = jax.random.split(key, 3)
    params["Wo"] = xavier_uniform(kw, (nhid * nheads, nclass), nhid * nheads, nclass)
    ao = xavier_uniform(ka, (2, nclass), 1, 2 * nclass)
    params["a1o"] = ao[0:1]
    params["a2o"] = ao[1:2]
    params["gamma_o"] = jnp.ones((1, nclass), jnp.float32)
    params["beta_o"] = jnp.zeros((1, nclass), jnp.float32)
    return params


# ----------------------------------------------------------------------------
if __name__ == "__main__":
    B, N = 2, 16
    nfeat, nhid, nclass, nheads = 32, 16, 8, 2
    alpha = 0.2

    key = jax.random.PRNGKey(0)
    kx, kadj, kp = jax.random.split(key, 3)

    # x is only consumed as bf16 by the MXU -> cast once upstream.
    x = jax.random.normal(kx, (B, N, nfeat), jnp.float32).astype(jnp.bfloat16)
    # adjacency shipped as int8 0/1 with self-loops (no wrapper-side cast).
    adj = jax.random.uniform(kadj, (B, N, N)) > 0.5
    adj = jnp.logical_or(
        adj, jnp.broadcast_to(jnp.eye(N, dtype=bool), (B, N, N))).astype(jnp.int8)

    params = init_gat_params(kp, nfeat, nhid, nclass, nheads)

    out = gat_forward(x, adj, params, alpha=alpha)
    out = jax.block_until_ready(out)
    assert out.shape == (B, N, nclass) and out.dtype == jnp.float32
    assert bool(jnp.all(jnp.isfinite(out)))
    print("KERNEL_OK")
</pallas_src>

<mosaic_0001>
module attributes {stable_mosaic.version = 11 : i64} {
  func.func @kernel(%arg0: i32, %arg1: memref<1x16x32xbf16, #tpu.memory_space<vmem>>, %arg2: memref<1x16x16xi8, #tpu.memory_space<vmem>>, %arg3: memref<32x32xbf16, #tpu.memory_space<vmem>>, %arg4: memref<32x2xbf16, #tpu.memory_space<vmem>>, %arg5: memref<2x32xbf16, #tpu.memory_space<vmem>>, %arg6: memref<32x2xf32, #tpu.memory_space<vmem>>, %arg7: memref<2x32xf32, #tpu.memory_space<vmem>>, %arg8: memref<1x32xf32, #tpu.memory_space<vmem>>, %arg9: memref<1x32xf32, #tpu.memory_space<vmem>>, %arg10: memref<1x32xf32, #tpu.memory_space<vmem>>, %arg11: memref<1x32xf32, #tpu.memory_space<vmem>>, %arg12: memref<32x8xbf16, #tpu.memory_space<vmem>>, %arg13: memref<1x8xf32, #tpu.memory_space<vmem>>, %arg14: memref<1x8xf32, #tpu.memory_space<vmem>>, %arg15: memref<1x8xf32, #tpu.memory_space<vmem>>, %arg16: memref<1x8xf32, #tpu.memory_space<vmem>>, %arg17: memref<1x16x128xf32, #tpu.memory_space<vmem>>, %arg18: memref<16x32xf32, #tpu.memory_space<vmem>>) attributes {dimension_semantics = [#tpu.dimension_semantics<parallel>], iteration_bounds = array<i64: 2>, scalar_prefetch = 0 : i64, scratch_operands = 1 : i64, tpu.core_type = #tpu.core_type<tc>, window_params = [{transform_indices = @transform_0, window_bounds = array<i64: 1, 16, 32>}, {transform_indices = @transform_1, window_bounds = array<i64: 1, 16, 16>}, {pipeline_mode = #tpu.pipeline_mode<synchronous>, transform_indices = @transform_2, window_bounds = array<i64: 32, 32>}, {pipeline_mode = #tpu.pipeline_mode<synchronous>, transform_indices = @transform_3, window_bounds = array<i64: 32, 2>}, {pipeline_mode = #tpu.pipeline_mode<synchronous>, transform_indices = @transform_4, window_bounds = array<i64: 2, 32>}, {pipeline_mode = #tpu.pipeline_mode<synchronous>, transform_indices = @transform_5, window_bounds = array<i64: 32, 2>}, {pipeline_mode = #tpu.pipeline_mode<synchronous>, transform_indices = @transform_6, window_bounds = array<i64: 2, 32>}, {pipeline_mode = #tpu.pipeline_mode<synchronous>, transform_indices = @transform_7, window_bounds = array<i64: 1, 32>}, {pipeline_mode = #tpu.pipeline_mode<synchronous>, transform_indices = @transform_8, window_bounds = array<i64: 1, 32>}, {pipeline_mode = #tpu.pipeline_mode<synchronous>, transform_indices = @transform_9, window_bounds = array<i64: 1, 32>}, {pipeline_mode = #tpu.pipeline_mode<synchronous>, transform_indices = @transform_10, window_bounds = array<i64: 1, 32>}, {pipeline_mode = #tpu.pipeline_mode<synchronous>, transform_indices = @transform_11, window_bounds = array<i64: 32, 8>}, {pipeline_mode = #tpu.pipeline_mode<synchronous>, transform_indices = @transform_12, window_bounds = array<i64: 1, 8>}, {pipeline_mode = #tpu.pipeline_mode<synchronous>, transform_indices = @transform_13, window_bounds = array<i64: 1, 8>}, {pipeline_mode = #tpu.pipeline_mode<synchronous>, transform_indices = @transform_14, window_bounds = array<i64: 1, 8>}, {pipeline_mode = #tpu.pipeline_mode<synchronous>, transform_indices = @transform_15, window_bounds = array<i64: 1, 8>}, {transform_indices = @transform_16, window_bounds = array<i64: 1, 16, 128>}]} {
    %c0 = arith.constant 0 : index
    %c0_0 = arith.constant 0 : index
    %c0_1 = arith.constant 0 : index
    %0 = vector.load %arg1[%c0, %c0_0, %c0_1] : memref<1x16x32xbf16, #tpu.memory_space<vmem>>, vector<1x16x32xbf16>
    %1 = vector.shape_cast %0 : vector<1x16x32xbf16> to vector<16x32xbf16>
    %c0_2 = arith.constant 0 : index
    %c0_3 = arith.constant 0 : index
    %c0_4 = arith.constant 0 : index
    %2 = vector.load %arg2[%c0_2, %c0_3, %c0_4] : memref<1x16x16xi8, #tpu.memory_space<vmem>>, vector<1x16x16xi8>
    %3 = vector.shape_cast %2 : vector<1x16x16xi8> to vector<16x16xi8>
    %4 = arith.sitofp %3 : vector<16x16xi8> to vector<16x16xf32>
    %cst = arith.constant 1.000000e+00 : f32
    %5 = vector.broadcast %cst : f32 to vector<16x16xf32>
    %6 = arith.subf %4, %5 : vector<16x16xf32>
    %cst_5 = arith.constant 9.000000e+15 : f32
    %7 = vector.broadcast %cst_5 : f32 to vector<16x16xf32>
    %8 = arith.mulf %6, %7 : vector<16x16xf32>
    %c0_6 = arith.constant 0 : index
    %c0_7 = arith.constant 0 : index
    %9 = vector.load %arg3[%c0_6, %c0_7] : memref<32x32xbf16, #tpu.memory_space<vmem>>, vector<32x32xbf16>
    %cst_8 = arith.constant dense<0.000000e+00> : vector<16x32xf32>
    %10 = tpu.matmul %1, %9, %cst_8 {dimension_numbers = #tpu.dot_dimension_numbers<[1], [0], [0], [1], [0, 0, 1, 1], [], []>} : vector<16x32xbf16>, vector<32x32xbf16>, vector<16x32xf32> -> vector<16x32xf32>
    %11 = arith.truncf %10 : vector<16x32xf32> to vector<16x32xbf16>
    %c0_9 = arith.constant 0 : index
    %c0_10 = arith.constant 0 : index
    %12 = vector.load %arg4[%c0_9, %c0_10] : memref<32x2xbf16, #tpu.memory_space<vmem>>, vector<32x2xbf16>
    %cst_11 = arith.constant dense<0.000000e+00> : vector<16x2xf32>
    %13 = tpu.matmul %11, %12, %cst_11 {dimension_numbers = #tpu.dot_dimension_numbers<[1], [0], [0], [1], [0, 0, 1, 1], [], []>} : vector<16x32xbf16>, vector<32x2xbf16>, vector<16x2xf32> -> vector<16x2xf32>
    %c0_12 = arith.constant 0 : index
    %c0_13 = arith.constant 0 : index
    %14 = vector.load %arg5[%c0_12, %c0_13] : memref<2x32xbf16, #tpu.memory_space<vmem>>, vector<2x32xbf16>
    %cst_14 = arith.constant dense<0.000000e+00> : vector<2x16xf32>
    %15 = tpu.matmul %14, %11, %cst_14 {dimension_numbers = #tpu.dot_dimension_numbers<[1], [1], [0], [0], [0, 0, 1, 0], [], []>} : vector<2x32xbf16>, vector<16x32xbf16>, vector<2x16xf32> -> vector<2x16xf32>
    %16 = vector.extract_strided_slice %13 {offsets = [0, 0], sizes = [16, 1], strides = [1, 1]} : vector<16x2xf32> to vector<16x1xf32>
    %17 = vector.extract_strided_slice %15 {offsets = [0, 0], sizes = [1, 16], strides = [1, 1]} : vector<2x16xf32> to vector<1x16xf32>
    %18 = vector.broadcast %16 : vector<16x1xf32> to vector<16x16xf32>
    %19 = vector.broadcast %17 : vector<1x16xf32> to vector<16x16xf32>
    %20 = arith.addf %18, %19 : vector<16x16xf32>
    %21 = vector.extract_strided_slice %11 {offsets = [0, 0], sizes = [16, 16], strides = [1, 1]} : vector<16x32xbf16> to vector<16x16xbf16>
    %22 = vector.extract_strided_slice %10 {offsets = [0, 0], sizes = [16, 16], strides = [1, 1]} : vector<16x32xf32> to vector<16x16xf32>
    %cst_15 = arith.constant 2.000000e-01 : f32
    %23 = vector.broadcast %cst_15 : f32 to vector<16x16xf32>
    %24 = arith.mulf %23, %20 : vector<16x16xf32>
    %25 = arith.maximumf %20, %24 : vector<16x16xf32>
    %26 = arith.addf %25, %8 : vector<16x16xf32>
    %cst_16 = arith.constant dense<0xFF800000> : vector<16xf32>
    %27 = vector.multi_reduction <maximumf>, %26, %cst_16 [1] : vector<16x16xf32> to vector<16xf32>
    %28 = vector.shape_cast %27 : vector<16xf32> to vector<16x1xf32>
    %29 = vector.broadcast %28 : vector<16x1xf32> to vector<16x16xf32>
    %30 = arith.subf %26, %29 : vector<16x16xf32>
    %31 = math.exp %30 : vector<16x16xf32>
    %cst_17 = arith.constant dense<0.000000e+00> : vector<16xf32>
    %32 = vector.multi_reduction <add>, %31, %cst_17 [1] : vector<16x16xf32> to vector<16xf32>
    %33 = vector.shape_cast %32 : vector<16xf32> to vector<16x1xf32>
    %34 = tpu.reciprocal %33 {approx = true} : vector<16x1xf32> -> vector<16x1xf32>
    %35 = vector.broadcast %34 : vector<16x1xf32> to vector<16x16xf32>
    %36 = arith.mulf %31, %35 : vector<16x16xf32>
    %37 = arith.truncf %36 : vector<16x16xf32> to vector<16x16xbf16>
    %cst_18 = arith.constant dense<0.000000e+00> : vector<16x16xf32>
    %38 = tpu.matmul %37, %21, %cst_18 {dimension_numbers = #tpu.dot_dimension_numbers<[1], [0], [0], [1], [0, 0, 1, 1], [], []>} : vector<16x16xbf16>, vector<16x16xbf16>, vector<16x16xf32> -> vector<16x16xf32>
    %39 = arith.addf %38, %22 : vector<16x16xf32>
    %c0_19 = arith.constant 0 : index
    %c0_20 = arith.constant 0 : index
    %40 = vector.load %arg18[%c0_19, %c0_20] : memref<16x32xf32, #tpu.memory_space<vmem>>, vector<16x16xf32>
    tpu.vector_store %arg18[%c0_19, %c0_20], %39 {strides = array<i32>} : memref<16x32xf32, #tpu.memory_space<vmem>>, vector<16x16xf32>,
    %41 = vector.extract_strided_slice %13 {offsets = [0, 1], sizes = [16, 1], strides = [1, 1]} : vector<16x2xf32> to vector<16x1xf32>
    %42 = vector.extract_strided_slice %15 {offsets = [1, 0], sizes = [1, 16], strides = [1, 1]} : vector<2x16xf32> to vector<1x16xf32>
    %43 = vector.broadcast %41 : vector<16x1xf32> to vector<16x16xf32>
    %44 = vector.broadcast %42 : vector<1x16xf32> to vector<16x16xf32>
    %45 = arith.addf %43, %44 : vector<16x16xf32>
    %46 = vector.extract_strided_slice %11 {offsets = [0, 16], sizes = [16, 16], strides = [1, 1]} : vector<16x32xbf16> to vector<16x16xbf16>
    %47 = vector.extract_strided_slice %10 {offsets = [0, 16], sizes = [16, 16], strides = [1, 1]} : vector<16x32xf32> to vector<16x16xf32>
    %cst_21 = arith.constant 2.000000e-01 : f32
    %48 = vector.broadcast %cst_21 : f32 to vector<16x16xf32>
    %49 = arith.mulf %48, %45 : vector<16x16xf32>
    %50 = arith.maximumf %45, %49 : vector<16x16xf32>
    %51 = arith.addf %50, %8 : vector<16x16xf32>
    %cst_22 = arith.constant dense<0xFF800000> : vector<16xf32>
    %52 = vector.multi_reduction <maximumf>, %51, %cst_22 [1] : vector<16x16xf32> to vector<16xf32>
    %53 = vector.shape_cast %52 : vector<16xf32> to vector<16x1xf32>
    %54 = vector.broadcast %53 : vector<16x1xf32> to vector<16x16xf32>
    %55 = arith.subf %51, %54 : vector<16x16xf32>
    %56 = math.exp %55 : vector<16x16xf32>
    %cst_23 = arith.constant dense<0.000000e+00> : vector<16xf32>
    %57 = vector.multi_reduction <add>, %56, %cst_23 [1] : vector<16x16xf32> to vector<16xf32>
    %58 = vector.shape_cast %57 : vector<16xf32> to vector<16x1xf32>
    %59 = tpu.reciprocal %58 {approx = true} : vector<16x1xf32> -> vector<16x1xf32>
    %60 = vector.broadcast %59 : vector<16x1xf32> to vector<16x16xf32>
    %61 = arith.mulf %56, %60 : vector<16x16xf32>
    %62 = arith.truncf %61 : vector<16x16xf32> to vector<16x16xbf16>
    %cst_24 = arith.constant dense<0.000000e+00> : vector<16x16xf32>
    %63 = tpu.matmul %62, %46, %cst_24 {dimension_numbers = #tpu.dot_dimension_numbers<[1], [0], [0], [1], [0, 0, 1, 1], [], []>} : vector<16x16xbf16>, vector<16x16xbf16>, vector<16x16xf32> -> vector<16x16xf32>
    %64 = arith.addf %63, %47 : vector<16x16xf32>
    %c0_25 = arith.constant 0 : index
    %c16 = arith.constant 16 : index
    %65 = vector.load %arg18[%c0_25, %c16] : memref<16x32xf32, #tpu.memory_space<vmem>>, vector<16x16xf32>
    tpu.vector_store %arg18[%c0_25, %c16], %64 {strides = array<i32>} : memref<16x32xf32, #tpu.memory_space<vmem>>, vector<16x16xf32>,
    %c0_26 = arith.constant 0 : index
    %c0_27 = arith.constant 0 : index
    %66 = vector.load %arg18[%c0_26, %c0_27] : memref<16x32xf32, #tpu.memory_space<vmem>>, vector<16x32xf32>
    %c0_28 = arith.constant 0 : index
    %c0_29 = arith.constant 0 : index
    %67 = vector.load %arg6[%c0_28, %c0_29] : memref<32x2xf32, #tpu.memory_space<vmem>>, vector<32x2xf32>
    %cst_30 = arith.constant dense<0.000000e+00> : vector<16x2xf32>
    %68 = tpu.matmul %66, %67, %cst_30 {dimension_numbers = #tpu.dot_dimension_numbers<[1], [0], [0], [1], [0, 0, 1, 1], [], []>} : vector<16x32xf32>, vector<32x2xf32>, vector<16x2xf32> -> vector<16x2xf32>
    %cst_31 = arith.constant 6.250000e-02 : f32
    %69 = vector.broadcast %cst_31 : f32 to vector<16x2xf32>
    %70 = arith.mulf %68, %69 : vector<16x2xf32>
    %c0_32 = arith.constant 0 : index
    %c0_33 = arith.constant 0 : index
    %71 = vector.load %arg7[%c0_32, %c0_33] : memref<2x32xf32, #tpu.memory_space<vmem>>, vector<2x32xf32>
    %cst_34 = arith.constant dense<0.000000e+00> : vector<16x32xf32>
    %72 = tpu.matmul %70, %71, %cst_34 {dimension_numbers = #tpu.dot_dimension_numbers<[1], [0], [0], [1], [0, 0, 1, 1], [], []>} : vector<16x2xf32>, vector<2x32xf32>, vector<16x32xf32> -> vector<16x32xf32>
    %73 = arith.subf %66, %72 : vector<16x32xf32>
    %74 = arith.mulf %73, %73 : vector<16x32xf32>
    %c0_35 = arith.constant 0 : index
    %c0_36 = arith.constant 0 : index
    %75 = vector.load %arg6[%c0_35, %c0_36] : memref<32x2xf32, #tpu.memory_space<vmem>>, vector<32x2xf32>
    %cst_37 = arith.constant dense<0.000000e+00> : vector<16x2xf32>
    %76 = tpu.matmul %74, %75, %cst_37 {dimension_numbers = #tpu.dot_dimension_numbers<[1], [0], [0], [1], [0, 0, 1, 1], [], []>} : vector<16x32xf32>, vector<32x2xf32>, vector<16x2xf32> -> vector<16x2xf32>
    %cst_38 = arith.constant 6.250000e-02 : f32
    %77 = vector.broadcast %cst_38 : f32 to vector<16x2xf32>
    %78 = arith.mulf %76, %77 : vector<16x2xf32>
    %cst_39 = arith.constant 9.99999974E-6 : f32
    %79 = vector.broadcast %cst_39 : f32 to vector<16x2xf32>
    %80 = arith.addf %78, %79 : vector<16x2xf32>
    %81 = math.rsqrt %80 : vector<16x2xf32>
    %c0_40 = arith.constant 0 : index
    %c0_41 = arith.constant 0 : index
    %82 = vector.load %arg7[%c0_40, %c0_41] : memref<2x32xf32, #tpu.memory_space<vmem>>, vector<2x32xf32>
    %cst_42 = arith.constant dense<0.000000e+00> : vector<16x32xf32>
    %83 = tpu.matmul %81, %82, %cst_42 {dimension_numbers = #tpu.dot_dimension_numbers<[1], [0], [0], [1], [0, 0, 1, 1], [], []>} : vector<16x2xf32>, vector<2x32xf32>, vector<16x32xf32> -> vector<16x32xf32>
    %84 = arith.mulf %73, %83 : vector<16x32xf32>
    %c0_43 = arith.constant 0 : index
    %c0_44 = arith.constant 0 : index
    %85 = vector.load %arg8[%c0_43, %c0_44] : memref<1x32xf32, #tpu.memory_space<vmem>>, vector<1x32xf32>
    %86 = vector.broadcast %85 : vector<1x32xf32> to vector<16x32xf32>
    %87 = arith.mulf %84, %86 : vector<16x32xf32>
    %c0_45 = arith.constant 0 : index
    %c0_46 = arith.constant 0 : index
    %88 = vector.load %arg9[%c0_45, %c0_46] : memref<1x32xf32, #tpu.memory_space<vmem>>, vector<1x32xf32>
    %89 = vector.broadcast %88 : vector<1x32xf32> to vector<16x32xf32>
    %90 = arith.addf %87, %89 : vector<16x32xf32>
    %cst_47 = arith.constant 0.000000e+00 : f32
    %91 = vector.broadcast %cst_47 : f32 to vector<16x32xf32>
    %92 = arith.cmpf ogt, %90, %91 : vector<16x32xf32>
    %93 = math.exp %90 : vector<16x32xf32>
    %cst_48 = arith.constant 1.000000e+00 : f32
    %94 = vector.broadcast %cst_48 : f32 to vector<16x32xf32>
    %95 = arith.subf %93, %94 : vector<16x32xf32>
    %96 = arith.select %92, %90, %95 : vector<16x32xi1>, vector<16x32xf32>
    %cst_49 = arith.constant dense<0.000000e+00> : vector<16xf32>
    %97 = vector.multi_reduction <add>, %96, %cst_49 [1] : vector<16x32xf32> to vector<16xf32>
    %98 = vector.shape_cast %97 : vector<16xf32> to vector<16x1xf32>
    %cst_50 = arith.constant 3.200000e+01 : f32
    %99 = vector.broadcast %cst_50 : f32 to vector<16x1xf32>
    %100 = arith.divf %98, %99 : vector<16x1xf32>
    %101 = vector.broadcast %100 : vector<16x1xf32> to vector<16x32xf32>
    %102 = arith.subf %96, %101 : vector<16x32xf32>
    %103 = arith.mulf %102, %102 : vector<16x32xf32>
    %cst_51 = arith.constant dense<0.000000e+00> : vector<16xf32>
    %104 = vector.multi_reduction <add>, %103, %cst_51 [1] : vector<16x32xf32> to vector<16xf32>
    %105 = vector.shape_cast %104 : vector<16xf32> to vector<16x1xf32>
    %cst_52 = arith.constant 3.200000e+01 : f32
    %106 = vector.broadcast %cst_52 : f32 to vector<16x1xf32>
    %107 = arith.divf %105, %106 : vector<16x1xf32>
    %cst_53 = arith.constant 9.99999974E-6 : f32
    %108 = vector.broadcast %cst_53 : f32 to vector<16x1xf32>
    %109 = arith.addf %107, %108 : vector<16x1xf32>
    %110 = math.rsqrt %109 : vector<16x1xf32>
    %111 = vector.broadcast %110 : vector<16x1xf32> to vector<16x32xf32>
    %112 = arith.mulf %102, %111 : vector<16x32xf32>
    %c0_54 = arith.constant 0 : index
    %c0_55 = arith.constant 0 : index
    %113 = vector.load %arg10[%c0_54, %c0_55] : memref<1x32xf32, #tpu.memory_space<vmem>>, vector<1x32xf32>
    %114 = vector.broadcast %113 : vector<1x32xf32> to vector<16x32xf32>
    %115 = arith.mulf %112, %114 : vector<16x32xf32>
    %c0_56 = arith.constant 0 : index
    %c0_57 = arith.constant 0 : index
    %116 = vector.load %arg11[%c0_56, %c0_57] : memref<1x32xf32, #tpu.memory_space<vmem>>, vector<1x32xf32>
    %117 = vector.broadcast %116 : vector<1x32xf32> to vector<16x32xf32>
    %118 = arith.addf %115, %117 : vector<16x32xf32>
    %119 = arith.truncf %118 : vector<16x32xf32> to vector<16x32xbf16>
    %c0_58 = arith.constant 0 : index
    %c0_59 = arith.constant 0 : index
    %120 = vector.load %arg12[%c0_58, %c0_59] : memref<32x8xbf16, #tpu.memory_space<vmem>>, vector<32x8xbf16>
    %cst_60 = arith.constant dense<0.000000e+00> : vector<16x8xf32>
    %121 = tpu.matmul %119, %120, %cst_60 {dimension_numbers = #tpu.dot_dimension_numbers<[1], [0], [0], [1], [0, 0, 1, 1], [], []>} : vector<16x32xbf16>, vector<32x8xbf16>, vector<16x8xf32> -> vector<16x8xf32>
    %122 = arith.truncf %121 : vector<16x8xf32> to vector<16x8xbf16>
    %c0_61 = arith.constant 0 : index
    %c0_62 = arith.constant 0 : index
    %123 = vector.load %arg13[%c0_61, %c0_62] : memref<1x8xf32, #tpu.memory_space<vmem>>, vector<1x8xf32>
    %124 = vector.broadcast %123 : vector<1x8xf32> to vector<16x8xf32>
    %125 = arith.mulf %121, %124 : vector<16x8xf32>
    %cst_63 = arith.constant dense<0.000000e+00> : vector<16xf32>
    %126 = vector.multi_reduction <add>, %125, %cst_63 [1] : vector<16x8xf32> to vector<16xf32>
    %127 = vector.shape_cast %126 : vector<16xf32> to vector<16x1xf32>
    %c0_64 = arith.constant 0 : index
    %c0_65 = arith.constant 0 : index
    %128 = vector.load %arg14[%c0_64, %c0_65] : memref<1x8xf32, #tpu.memory_space<vmem>>, vector<1x8xf32>
    %cst_66 = arith.constant dense<0.000000e+00> : vector<1x16xf32>
    %129 = tpu.matmul %128, %121, %cst_66 {dimension_numbers = #tpu.dot_dimension_numbers<[1], [1], [0], [0], [0, 0, 1, 0], [], []>} : vector<1x8xf32>, vector<16x8xf32>, vector<1x16xf32> -> vector<1x16xf32>
    %130 = vector.broadcast %127 : vector<16x1xf32> to vector<16x16xf32>
    %131 = vector.broadcast %129 : vector<1x16xf32> to vector<16x16xf32>
    %132 = arith.addf %130, %131 : vector<16x16xf32>
    %cst_67 = arith.constant 2.000000e-01 : f32
    %133 = vector.broadcast %cst_67 : f32 to vector<16x16xf32>
    %134 = arith.mulf %133, %132 : vector<16x16xf32>
    %135 = arith.maximumf %132, %134 : vector<16x16xf32>
    %136 = arith.addf %135, %8 : vector<16x16xf32>
    %cst_68 = arith.constant dense<0xFF800000> : vector<16xf32>
    %137 = vector.multi_reduction <maximumf>, %136, %cst_68 [1] : vector<16x16xf32> to vector<16xf32>
    %138 = vector.shape_cast %137 : vector<16xf32> to vector<16x1xf32>
    %139 = vector.broadcast %138 : vector<16x1xf32> to vector<16x16xf32>
    %140 = arith.subf %136, %139 : vector<16x16xf32>
    %141 = math.exp %140 : vector<16x16xf32>
    %cst_69 = arith.constant dense<0.000000e+00> : vector<16xf32>
    %142 = vector.multi_reduction <add>, %141, %cst_69 [1] : vector<16x16xf32> to vector<16xf32>
    %143 = vector.shape_cast %142 : vector<16xf32> to vector<16x1xf32>
    %144 = tpu.reciprocal %143 {approx = true} : vector<16x1xf32> -> vector<16x1xf32>
    %145 = vector.broadcast %144 : vector<16x1xf32> to vector<16x16xf32>
    %146 = arith.mulf %141, %145 : vector<16x16xf32>
    %147 = arith.truncf %146 : vector<16x16xf32> to vector<16x16xbf16>
    %cst_70 = arith.constant dense<0.000000e+00> : vector<16x8xf32>
    %148 = tpu.matmul %147, %122, %cst_70 {dimension_numbers = #tpu.dot_dimension_numbers<[1], [0], [0], [1], [0, 0, 1, 1], [], []>} : vector<16x16xbf16>, vector<16x8xbf16>, vector<16x8xf32> -> vector<16x8xf32>
    %149 = arith.addf %148, %121 : vector<16x8xf32>
    %cst_71 = arith.constant dense<0.000000e+00> : vector<16xf32>
    %150 = vector.multi_reduction <add>, %149, %cst_71 [1] : vector<16x8xf32> to vector<16xf32>
    %151 = vector.shape_cast %150 : vector<16xf32> to vector<16x1xf32>
    %cst_72 = arith.constant 8.000000e+00 : f32
    %152 = vector.broadcast %cst_72 : f32 to vector<16x1xf32>
    %153 = arith.divf %151, %152 : vector<16x1xf32>
    %154 = vector.broadcast %153 : vector<16x1xf32> to vector<16x8xf32>
    %155 = arith.subf %149, %154 : vector<16x8xf32>
    %156 = arith.mulf %155, %155 : vector<16x8xf32>
    %cst_73 = arith.constant dense<0.000000e+00> : vector<16xf32>
    %157 = vector.multi_reduction <add>, %156, %cst_73 [1] : vector<16x8xf32> to vector<16xf32>
    %158 = vector.shape_cast %157 : vector<16xf32> to vector<16x1xf32>
    %cst_74 = arith.constant 8.000000e+00 : f32
    %159 = vector.broadcast %cst_74 : f32 to vector<16x1xf32>
    %160 = arith.divf %158, %159 : vector<16x1xf32>
    %cst_75 = arith.constant 9.99999974E-6 : f32
    %161 = vector.broadcast %cst_75 : f32 to vector<16x1xf32>
    %162 = arith.addf %160, %161 : vector<16x1xf32>
    %163 = math.rsqrt %162 : vector<16x1xf32>
    %164 = vector.broadcast %163 : vector<16x1xf32> to vector<16x8xf32>
    %165 = arith.mulf %155, %164 : vector<16x8xf32>
    %c0_76 = arith.constant 0 : index
    %c0_77 = arith.constant 0 : index
    %166 = vector.load %arg15[%c0_76, %c0_77] : memref<1x8xf32, #tpu.memory_space<vmem>>, vector<1x8xf32>
    %167 = vector.broadcast %166 : vector<1x8xf32> to vector<16x8xf32>
    %168 = arith.mulf %165, %167 : vector<16x8xf32>
    %c0_78 = arith.constant 0 : index
    %c0_79 = arith.constant 0 : index
    %169 = vector.load %arg16[%c0_78, %c0_79] : memref<1x8xf32, #tpu.memory_space<vmem>>, vector<1x8xf32>
    %170 = vector.broadcast %169 : vector<1x8xf32> to vector<16x8xf32>
    %171 = arith.addf %168, %170 : vector<16x8xf32>
    %cst_80 = arith.constant 5.000000e-01 : f32
    %172 = vector.broadcast %cst_80 : f32 to vector<16x8xf32>
    %173 = arith.mulf %172, %171 : vector<16x8xf32>
    %cst_81 = arith.constant 0.707106769 : f32
    %174 = vector.broadcast %cst_81 : f32 to vector<16x8xf32>
    %175 = arith.mulf %171, %174 : vector<16x8xf32>
    %176 = math.erf %175 : vector<16x8xf32>
    %cst_82 = arith.constant 1.000000e+00 : f32
    %177 = vector.broadcast %cst_82 : f32 to vector<16x8xf32>
    %178 = arith.addf %177, %176 : vector<16x8xf32>
    %179 = arith.mulf %173, %178 : vector<16x8xf32>
    %cst_83 = arith.constant 0.000000e+00 : f32
    %180 = vector.broadcast %cst_83 : f32 to vector<16x120xf32>
    %181 = tpu.concatenate %179, %180 in 1 : vector<16x8xf32>, vector<16x120xf32> -> vector<16x128xf32>
    %c0_84 = arith.constant 0 : index
    %c0_85 = arith.constant 0 : index
    %c0_86 = arith.constant 0 : index
    %182 = vector.load %arg17[%c0_84, %c0_85, %c0_86] : memref<1x16x128xf32, #tpu.memory_space<vmem>>, vector<1x16x128xf32>
    %183 = vector.shape_cast %182 : vector<1x16x128xf32> to vector<16x128xf32>
    %184 = vector.shape_cast %181 : vector<16x128xf32> to vector<1x16x128xf32>
    tpu.vector_store %arg17[%c0_84, %c0_85, %c0_86], %184 {strides = array<i32>} : memref<1x16x128xf32, #tpu.memory_space<vmem>>, vector<1x16x128xf32>,
    return
  }
  func.func @transform_0(%arg0: i32) -> (i32, i32, i32) {
    %c0_i32 = arith.constant 0 : i32
    %c0_i32_0 = arith.constant 0 : i32
    %c0_i32_1 = arith.constant 0 : i32
    return %arg0, %c0_i32, %c0_i32_0 : i32, i32, i32
  }
  func.func @transform_1(%arg0: i32) -> (i32, i32, i32) {
    %c0_i32 = arith.constant 0 : i32
    %c0_i32_0 = arith.constant 0 : i32
    %c0_i32_1 = arith.constant 0 : i32
    return %arg0, %c0_i32, %c0_i32_0 : i32, i32, i32
  }
  func.func @transform_2(%arg0: i32) -> (i32, i32) {
    %c0_i32 = arith.constant 0 : i32
    %c0_i32_0 = arith.constant 0 : i32
    %c0_i32_1 = arith.constant 0 : i32
    return %c0_i32, %c0_i32_0 : i32, i32
  }
  func.func @transform_3(%arg0: i32) -> (i32, i32) {
    %c0_i32 = arith.constant 0 : i32
    %c0_i32_0 = arith.constant 0 : i32
    %c0_i32_1 = arith.constant 0 : i32
    return %c0_i32, %c0_i32_0 : i32, i32
  }
  func.func @transform_4(%arg0: i32) -> (i32, i32) {
    %c0_i32 = arith.constant 0 : i32
    %c0_i32_0 = arith.constant 0 : i32
    %c0_i32_1 = arith.constant 0 : i32
    return %c0_i32, %c0_i32_0 : i32, i32
  }
  func.func @transform_5(%arg0: i32) -> (i32, i32) {
    %c0_i32 = arith.constant 0 : i32
    %c0_i32_0 = arith.constant 0 : i32
    %c0_i32_1 = arith.constant 0 : i32
    return %c0_i32, %c0_i32_0 : i32, i32
  }
  func.func @transform_6(%arg0: i32) -> (i32, i32) {
    %c0_i32 = arith.constant 0 : i32
    %c0_i32_0 = arith.constant 0 : i32
    %c0_i32_1 = arith.constant 0 : i32
    return %c0_i32, %c0_i32_0 : i32, i32
  }
  func.func @transform_7(%arg0: i32) -> (i32, i32) {
    %c0_i32 = arith.constant 0 : i32
    %c0_i32_0 = arith.constant 0 : i32
    %c0_i32_1 = arith.constant 0 : i32
    return %c0_i32, %c0_i32_0 : i32, i32
  }
  func.func @transform_8(%arg0: i32) -> (i32, i32) {
    %c0_i32 = arith.constant 0 : i32
    %c0_i32_0 = arith.constant 0 : i32
    %c0_i32_1 = arith.constant 0 : i32
    return %c0_i32, %c0_i32_0 : i32, i32
  }
  func.func @transform_9(%arg0: i32) -> (i32, i32) {
    %c0_i32 = arith.constant 0 : i32
    %c0_i32_0 = arith.constant 0 : i32
    %c0_i32_1 = arith.constant 0 : i32
    return %c0_i32, %c0_i32_0 : i32, i32
  }
  func.func @transform_10(%arg0: i32) -> (i32, i32) {
    %c0_i32 = arith.constant 0 : i32
    %c0_i32_0 = arith.constant 0 : i32
    %c0_i32_1 = arith.constant 0 : i32
    return %c0_i32, %c0_i32_0 : i32, i32
  }
  func.func @transform_11(%arg0: i32) -> (i32, i32) {
    %c0_i32 = arith.constant 0 : i32
    %c0_i32_0 = arith.constant 0 : i32
    %c0_i32_1 = arith.constant 0 : i32
    return %c0_i32, %c0_i32_0 : i32, i32
  }
  func.func @transform_12(%arg0: i32) -> (i32, i32) {
    %c0_i32 = arith.constant 0 : i32
    %c0_i32_0 = arith.constant 0 : i32
    %c0_i32_1 = arith.constant 0 : i32
    return %c0_i32, %c0_i32_0 : i32, i32
  }
  func.func @transform_13(%arg0: i32) -> (i32, i32) {
    %c0_i32 = arith.constant 0 : i32
    %c0_i32_0 = arith.constant 0 : i32
    %c0_i32_1 = arith.constant 0 : i32
    return %c0_i32, %c0_i32_0 : i32, i32
  }
  func.func @transform_14(%arg0: i32) -> (i32, i32) {
    %c0_i32 = arith.constant 0 : i32
    %c0_i32_0 = arith.constant 0 : i32
    %c0_i32_1 = arith.constant 0 : i32
    return %c0_i32, %c0_i32_0 : i32, i32
  }
  func.func @transform_15(%arg0: i32) -> (i32, i32) {
    %c0_i32 = arith.constant 0 : i32
    %c0_i32_0 = arith.constant 0 : i32
    %c0_i32_1 = arith.constant 0 : i32
    return %c0_i32, %c0_i32_0 : i32, i32
  }
  func.func @transform_16(%arg0: i32) -> (i32, i32, i32) {
    %c0_i32 = arith.constant 0 : i32
    %c0_i32_0 = arith.constant 0 : i32
    %c0_i32_1 = arith.constant 0 : i32
    return %arg0, %c0_i32, %c0_i32_0 : i32, i32, i32
  }
}

</mosaic_0001>

<llo_original>
// kernel: tpu_custom_call.1
$region0: #{tpu_custom_call.1}
  #allocation0 [shape = 'u32[]', space=smem, size = 0x4, offset = 0x4, fixed_abs, tag = 'smem constant byte address 0x4 - core index']
  #allocation1 [shape = 'u32[144,128]{1,0:T(1,128)}', space=vmem, size = 0x12000, scoped, tag = 'internal scratch']
  #allocation2 [shape = 'f32[16,32]{1,0:T(8,128)}', space=vmem, size = 0x2000, scoped, tag = 'scratch operand']
  %s0 = inlined_call_operand.vmem [shape: bf16[2,16,32], index: 0, kind: input, shape index: {}]
  %s1 = inlined_call_operand.vmem [shape: s8[2,16,16], index: 1, kind: input, shape index: {}]
  %s2 = inlined_call_operand.vmem [shape: bf16[32,32], index: 2, kind: input, shape index: {}]
  %s3 = inlined_call_operand.vmem [shape: bf16[32,2], index: 3, kind: input, shape index: {}]
  %s4 = inlined_call_operand.vmem [shape: bf16[2,32], index: 4, kind: input, shape index: {}]
  %s5 = inlined_call_operand.vmem [shape: f32[32,2], index: 5, kind: input, shape index: {}]
  %s6 = inlined_call_operand.vmem [shape: f32[2,32], index: 6, kind: input, shape index: {}]
  %s7 = inlined_call_operand.vmem [shape: f32[1,32], index: 7, kind: input, shape index: {}]
  %s8 = inlined_call_operand.vmem [shape: f32[1,32], index: 8, kind: input, shape index: {}]
  %s9 = inlined_call_operand.vmem [shape: f32[1,32], index: 9, kind: input, shape index: {}]
  %s10 = inlined_call_operand.vmem [shape: f32[1,32], index: 10, kind: input, shape index: {}]
  %s11 = inlined_call_operand.vmem [shape: bf16[32,8], index: 11, kind: input, shape index: {}]
  %s12 = inlined_call_operand.vmem [shape: f32[1,8], index: 12, kind: input, shape index: {}]
  %s13 = inlined_call_operand.vmem [shape: f32[1,8], index: 13, kind: input, shape index: {}]
  %s14 = inlined_call_operand.vmem [shape: f32[1,8], index: 14, kind: input, shape index: {}]
  %s15 = inlined_call_operand.vmem [shape: f32[1,8], index: 15, kind: input, shape index: {}]
  %s16 = inlined_call_operand.hbm [shape: f32[2,16,128], index: 16, kind: output, shape index: {}]
  %s17 = sld [smem:[#allocation0]]
  $region97: #{tpu_custom_call.1} parent=0
    _
  %s19 = ssub.s32 1, %s17
  %s20 = scalar_select 0, %s19, %s17
  $region1: #{tpu_custom_call.1} parent=0
    #allocation3 [shape = 'u8[16384]{0}', space=vmem, size = 0x4000, scoped, tag = 'output window, operand 0']
    #allocation4 [shape = 's32[2]{0}', space=sflag, size = 0x8, scoped, tag = 'scoped memory for tpu_custom_call.1']
    %21 = vsyncpa [#allocation4], 0
    %s22 = scalar_lea.sflag [#allocation4], 1
    %23 = vsyncpa %s22, 0
    loop: start=0, step=1, limit=4
    $region2: #{tpu_custom_call.1} parent=1 // loop_pre_header
      _
    $region3: #{tpu_custom_call.1} parent=1 // loop_header
      %s25 = sphi 0, %s29
      %p26 = scmp.ge.s32.totalorder %s25, 4
      %s35 = sphi 0, %s37
      %s38 = sphi 0, %s35
      %s39 = sphi 0, %s38
      %s55 = sphi 0, %s39
      %s61 = sphi 0, %s63
      %s64 = sphi 0, %s61
      %s65 = sphi 0, %s64
      %s81 = sphi 0, %s65
      %s85 = sphi 0, %s85
      %s87 = sphi 0, %s85
      %s88 = sphi 0, %s87
      %s102 = sphi 0, %s88
      %s106 = sphi 0, %s106
      %s108 = sphi 0, %s106
      %s109 = sphi 0, %s108
      %s123 = sphi 0, %s109
      %s127 = sphi 0, %s127
      %s129 = sphi 0, %s127
      %s130 = sphi 0, %s129
      %s144 = sphi 0, %s130
      %s148 = sphi 0, %s148
      %s150 = sphi 0, %s148
      %s151 = sphi 0, %s150
      %s165 = sphi 0, %s151
      %s169 = sphi 0, %s169
      %s171 = sphi 0, %s169
      %s172 = sphi 0, %s171
      %s186 = sphi 0, %s172
      %s190 = sphi 0, %s190
      %s192 = sphi 0, %s190
      %s193 = sphi 0, %s192
      %s207 = sphi 0, %s193
      %s211 = sphi 0, %s211
      %s213 = sphi 0, %s211
      %s214 = sphi 0, %s213
      %s228 = sphi 0, %s214
      %s232 = sphi 0, %s232
      %s234 = sphi 0, %s232
      %s235 = sphi 0, %s234
      %s249 = sphi 0, %s235
      %s253 = sphi 0, %s253
      %s255 = sphi 0, %s253
      %s256 = sphi 0, %s255
      %s270 = sphi 0, %s256
      %s274 = sphi 0, %s274
      %s276 = sphi 0, %s274
      %s277 = sphi 0, %s276
      %s291 = sphi 0, %s277
      %s295 = sphi 0, %s295
      %s297 = sphi 0, %s295
      %s298 = sphi 0, %s297
      %s312 = sphi 0, %s298
      %s316 = sphi 0, %s316
      %s318 = sphi 0, %s316
      %s319 = sphi 0, %s318
      %s333 = sphi 0, %s319
      %s337 = sphi 0, %s337
      %s339 = sphi 0, %s337
      %s340 = sphi 0, %s339
      %s354 = sphi 0, %s340
      %s358 = sphi 0, %s358
      %s360 = sphi 0, %s358
      %s361 = sphi 0, %s360
      %s375 = sphi 0, %s361
      %s381 = sphi 0, %s383
      %s384 = sphi 0, %s381
      %s385 = sphi 0, %s384
      %s401 = sphi 0, %s385
    $region4: #{tpu_custom_call.1} parent=1 // loop_header_branch
      %28 = sbr.rel (%p26) target = $region8
    $region5: #{tpu_custom_call.1} parent=1 // loop_body
      %s30 = ssub.s32 %s25, 1
      %s31 = ssub.s32 %s25, 2
      %s32 = sadd.s32 %s25, 1
      %s33 = ssub.s32 %s25, %s32
      %p34 = scmp.eq.s32.totalorder %s33, 0
      %s36 = sadd.s32 %s35, 1
      %s37 = scalar_select %p34, %s35, %s36
      %p40 = pneg %p34
      %p41 = scmp.eq.s32.totalorder %s25, 1
      %p42 = por %p40, %p41
      %p43 = scmp.ne.s32.totalorder %s35, %s38
      %p44 = scmp.eq.s32.totalorder %s25, 0
      %p45 = por %p43, %p44
      %p46 = scmp.ne.s32.totalorder %s35, %s38
      %p47 = scmp.eq.s32.totalorder %s30, 1
      %p48 = por %p46, %p47
      %p49 = scmp.ne.s32.totalorder %s38, %s39
      %p50 = scmp.eq.s32.totalorder %s30, 0
      %p51 = por %p49, %p50
      %p52 = scmp.ne.s32.totalorder %s38, %s39
      %p53 = scmp.eq.s32.totalorder %s31, 1
      %p54 = por %p52, %p53
      %p56 = scmp.ne.s32.totalorder %s39, %s55
      %p57 = scmp.eq.s32.totalorder %s31, 0
      %p58 = por %p56, %p57
      %s59 = ssub.s32 %s25, %s32
      %p60 = scmp.eq.s32.totalorder %s59, 0
      %s62 = sadd.s32 %s61, 1
      %s63 = scalar_select %p60, %s61, %s62
      %p66 = pneg %p60
      %p67 = scmp.eq.s32.totalorder %s25, 1
      %p68 = por %p66, %p67
      %p69 = scmp.ne.s32.totalorder %s61, %s64
      %p70 = scmp.eq.s32.totalorder %s25, 0
      %p71 = por %p69, %p70
      %p72 = scmp.ne.s32.totalorder %s61, %s64
      %p73 = scmp.eq.s32.totalorder %s30, 1
      %p74 = por %p72, %p73
      %p75 = scmp.ne.s32.totalorder %s64, %s65
      %p76 = scmp.eq.s32.totalorder %s30, 0
      %p77 = por %p75, %p76
      %p78 = scmp.ne.s32.totalorder %s64, %s65
      %p79 = scmp.eq.s32.totalorder %s31, 1
      %p80 = por %p78, %p79
      %p82 = scmp.ne.s32.totalorder %s65, %s81
      %p83 = scmp.eq.s32.totalorder %s31, 0
      %p84 = por %p82, %p83
      %s86 = sadd.s32 %s85, 1
      %p89 = scmp.eq.s32.totalorder %s25, 1
      %p90 = scmp.ne.s32.totalorder %s85, %s87
      %p91 = scmp.eq.s32.totalorder %s25, 0
      %p92 = por %p90, %p91
      %p93 = scmp.ne.s32.totalorder %s85, %s87
      %p94 = scmp.eq.s32.totalorder %s30, 1
      %p95 = por %p93, %p94
      %p96 = scmp.ne.s32.totalorder %s87, %s88
      %p97 = scmp.eq.s32.totalorder %s30, 0
      %p98 = por %p96, %p97
      %p99 = scmp.ne.s32.totalorder %s87, %s88
      %p100 = scmp.eq.s32.totalorder %s31, 1
      %p101 = por %p99, %p100
      %p103 = scmp.ne.s32.totalorder %s88, %s102
      %p104 = scmp.eq.s32.totalorder %s31, 0
      %p105 = por %p103, %p104
      %s107 = sadd.s32 %s106, 1
      %p110 = scmp.eq.s32.totalorder %s25, 1
      %p111 = scmp.ne.s32.totalorder %s106, %s108
      %p112 = scmp.eq.s32.totalorder %s25, 0
      %p113 = por %p111, %p112
      %p114 = scmp.ne.s32.totalorder %s106, %s108
      %p115 = scmp.eq.s32.totalorder %s30, 1
      %p116 = por %p114, %p115
      %p117 = scmp.ne.s32.totalorder %s108, %s109
      %p118 = scmp.eq.s32.totalorder %s30, 0
      %p119 = por %p117, %p118
      %p120 = scmp.ne.s32.totalorder %s108, %s109
      %p121 = scmp.eq.s32.totalorder %s31, 1
      %p122 = por %p120, %p121
      %p124 = scmp.ne.s32.totalorder %s109, %s123
      %p125 = scmp.eq.s32.totalorder %s31, 0
      %p126 = por %p124, %p125
      %s128 = sadd.s32 %s127, 1
      %p131 = scmp.eq.s32.totalorder %s25, 1
      %p132 = scmp.ne.s32.totalorder %s127, %s129
      %p133 = scmp.eq.s32.totalorder %s25, 0
      %p134 = por %p132, %p133
      %p135 = scmp.ne.s32.totalorder %s127, %s129
      %p136 = scmp.eq.s32.totalorder %s30, 1
      %p137 = por %p135, %p136
      %p138 = scmp.ne.s32.totalorder %s129, %s130
      %p139 = scmp.eq.s32.totalorder %s30, 0
      %p140 = por %p138, %p139
      %p141 = scmp.ne.s32.totalorder %s129, %s130
      %p142 = scmp.eq.s32.totalorder %s31, 1
      %p143 = por %p141, %p142
      %p145 = scmp.ne.s32.totalorder %s130, %s144
      %p146 = scmp.eq.s32.totalorder %s31, 0
      %p147 = por %p145, %p146
      %s149 = sadd.s32 %s148, 1
      %p152 = scmp.eq.s32.totalorder %s25, 1
      %p153 = scmp.ne.s32.totalorder %s148, %s150
      %p154 = scmp.eq.s32.totalorder %s25, 0
      %p155 = por %p153, %p154
      %p156 = scmp.ne.s32.totalorder %s148, %s150
      %p157 = scmp.eq.s32.totalorder %s30, 1
      %p158 = por %p156, %p157
      %p159 = scmp.ne.s32.totalorder %s150, %s151
      %p160 = scmp.eq.s32.totalorder %s30, 0
      %p161 = por %p159, %p160
      %p162 = scmp.ne.s32.totalorder %s150, %s151
      %p163 = scmp.eq.s32.totalorder %s31, 1
      %p164 = por %p162, %p163
      %p166 = scmp.ne.s32.totalorder %s151, %s165
      %p167 = scmp.eq.s32.totalorder %s31, 0
      %p168 = por %p166, %p167
      %s170 = sadd.s32 %s169, 1
      %p173 = scmp.eq.s32.totalorder %s25, 1
      %p174 = scmp.ne.s32.totalorder %s169, %s171
      %p175 = scmp.eq.s32.totalorder %s25, 0
      %p176 = por %p174, %p175
      %p177 = scmp.ne.s32.totalorder %s169, %s171
      %p178 = scmp.eq.s32.totalorder %s30, 1
      %p179 = por %p177, %p178
      %p180 = scmp.ne.s32.totalorder %s171, %s172
      %p181 = scmp.eq.s32.totalorder %s30, 0
      %p182 = por %p180, %p181
      %p183 = scmp.ne.s32.totalorder %s171, %s172
      %p184 = scmp.eq.s32.totalorder %s31, 1
      %p185 = por %p183, %p184
      %p187 = scmp.ne.s32.totalorder %s172, %s186
      %p188 = scmp.eq.s32.totalorder %s31, 0
      %p189 = por %p187, %p188
      %s191 = sadd.s32 %s190, 1
      %p194 = scmp.eq.s32.totalorder %s25, 1
      %p195 = scmp.ne.s32.totalorder %s190, %s192
      %p196 = scmp.eq.s32.totalorder %s25, 0
      %p197 = por %p195, %p196
      %p198 = scmp.ne.s32.totalorder %s190, %s192
      %p199 = scmp.eq.s32.totalorder %s30, 1
      %p200 = por %p198, %p199
      %p201 = scmp.ne.s32.totalorder %s192, %s193
      %p202 = scmp.eq.s32.totalorder %s30, 0
      %p203 = por %p201, %p202
      %p204 = scmp.ne.s32.totalorder %s192, %s193
      %p205 = scmp.eq.s32.totalorder %s31, 1
      %p206 = por %p204, %p205
      %p208 = scmp.ne.s32.totalorder %s193, %s207
      %p209 = scmp.eq.s32.totalorder %s31, 0
      %p210 = por %p208, %p209
      %s212 = sadd.s32 %s211, 1
      %p215 = scmp.eq.s32.totalorder %s25, 1
      %p216 = scmp.ne.s32.totalorder %s211, %s213
      %p217 = scmp.eq.s32.totalorder %s25, 0
      %p218 = por %p216, %p217
      %p219 = scmp.ne.s32.totalorder %s211, %s213
      %p220 = scmp.eq.s32.totalorder %s30, 1
      %p221 = por %p219, %p220
      %p222 = scmp.ne.s32.totalorder %s213, %s214
      %p223 = scmp.eq.s32.totalorder %s30, 0
      %p224 = por %p222, %p223
      %p225 = scmp.ne.s32.totalorder %s213, %s214
      %p226 = scmp.eq.s32.totalorder %s31, 1
      %p227 = por %p225, %p226
      %p229 = scmp.ne.s32.totalorder %s214, %s228
      %p230 = scmp.eq.s32.totalorder %s31, 0
      %p231 = por %p229, %p230
      %s233 = sadd.s32 %s232, 1
      %p236 = scmp.eq.s32.totalorder %s25, 1
      %p237 = scmp.ne.s32.totalorder %s232, %s234
      %p238 = scmp.eq.s32.totalorder %s25, 0
      %p239 = por %p237, %p238
      %p240 = scmp.ne.s32.totalorder %s232, %s234
      %p241 = scmp.eq.s32.totalorder %s30, 1
      %p242 = por %p240, %p241
      %p243 = scmp.ne.s32.totalorder %s234, %s235
      %p244 = scmp.eq.s32.totalorder %s30, 0
      %p245 = por %p243, %p244
      %p246 = scmp.ne.s32.totalorder %s234, %s235
      %p247 = scmp.eq.s32.totalorder %s31, 1
      %p248 = por %p246, %p247
      %p250 = scmp.ne.s32.totalorder %s235, %s249
      %p251 = scmp.eq.s32.totalorder %s31, 0
      %p252 = por %p250, %p251
      %s254 = sadd.s32 %s253, 1
      %p257 = scmp.eq.s32.totalorder %s25, 1
      %p258 = scmp.ne.s32.totalorder %s253, %s255
      %p259 = scmp.eq.s32.totalorder %s25, 0
      %p260 = por %p258, %p259
      %p261 = scmp.ne.s32.totalorder %s253, %s255
      %p262 = scmp.eq.s32.totalorder %s30, 1
      %p263 = por %p261, %p262
      %p264 = scmp.ne.s32.totalorder %s255, %s256
      %p265 = scmp.eq.s32.totalorder %s30, 0
      %p266 = por %p264, %p265
      %p267 = scmp.ne.s32.totalorder %s255, %s256
      %p268 = scmp.eq.s32.totalorder %s31, 1
      %p269 = por %p267, %p268
      %p271 = scmp.ne.s32.totalorder %s256, %s270
      %p272 = scmp.eq.s32.totalorder %s31, 0
      %p273 = por %p271, %p272
      %s275 = sadd.s32 %s274, 1
      %p278 = scmp.eq.s32.totalorder %s25, 1
      %p279 = scmp.ne.s32.totalorder %s274, %s276
      %p280 = scmp.eq.s32.totalorder %s25, 0
      %p281 = por %p279, %p280
      %p282 = scmp.ne.s32.totalorder %s274, %s276
      %p283 = scmp.eq.s32.totalorder %s30, 1
      %p284 = por %p282, %p283
      %p285 = scmp.ne.s32.totalorder %s276, %s277
      %p286 = scmp.eq.s32.totalorder %s30, 0
      %p287 = por %p285, %p286
      %p288 = scmp.ne.s32.totalorder %s276, %s277
      %p289 = scmp.eq.s32.totalorder %s31, 1
      %p290 = por %p288, %p289
      %p292 = scmp.ne.s32.totalorder %s277, %s291
      %p293 = scmp.eq.s32.totalorder %s31, 0
      %p294 = por %p292, %p293
      %s296 = sadd.s32 %s295, 1
      %p299 = scmp.eq.s32.totalorder %s25, 1
      %p300 = scmp.ne.s32.totalorder %s295, %s297
      %p301 = scmp.eq.s32.totalorder %s25, 0
      %p302 = por %p300, %p301
      %p303 = scmp.ne.s32.totalorder %s295, %s297
      %p304 = scmp.eq.s32.totalorder %s30, 1
      %p305 = por %p303, %p304
      %p306 = scmp.ne.s32.totalorder %s297, %s298
      %p307 = scmp.eq.s32.totalorder %s30, 0
      %p308 = por %p306, %p307
      %p309 = scmp.ne.s32.totalorder %s297, %s298
      %p310 = scmp.eq.s32.totalorder %s31, 1
      %p311 = por %p309, %p310
      %p313 = scmp.ne.s32.totalorder %s298, %s312
      %p314 = scmp.eq.s32.totalorder %s31, 0
      %p315 = por %p313, %p314
      %s317 = sadd.s32 %s316, 1
      %p320 = scmp.eq.s32.totalorder %s25, 1
      %p321 = scmp.ne.s32.totalorder %s316, %s318
      %p322 = scmp.eq.s32.totalorder %s25, 0
      %p323 = por %p321, %p322
      %p324 = scmp.ne.s32.totalorder %s316, %s318
      %p325 = scmp.eq.s32.totalorder %s30, 1
      %p326 = por %p324, %p325
      %p327 = scmp.ne.s32.totalorder %s318, %s319
      %p328 = scmp.eq.s32.totalorder %s30, 0
      %p329 = por %p327, %p328
      %p330 = scmp.ne.s32.totalorder %s318, %s319
      %p331 = scmp.eq.s32.totalorder %s31, 1
      %p332 = por %p330, %p331
      %p334 = scmp.ne.s32.totalorder %s319, %s333
      %p335 = scmp.eq.s32.totalorder %s31, 0
      %p336 = por %p334, %p335
      %s338 = sadd.s32 %s337, 1
      %p341 = scmp.eq.s32.totalorder %s25, 1
      %p342 = scmp.ne.s32.totalorder %s337, %s339
      %p343 = scmp.eq.s32.totalorder %s25, 0
      %p344 = por %p342, %p343
      %p345 = scmp.ne.s32.totalorder %s337, %s339
      %p346 = scmp.eq.s32.totalorder %s30, 1
      %p347 = por %p345, %p346
      %p348 = scmp.ne.s32.totalorder %s339, %s340
      %p349 = scmp.eq.s32.totalorder %s30, 0
      %p350 = por %p348, %p349
      %p351 = scmp.ne.s32.totalorder %s339, %s340
      %p352 = scmp.eq.s32.totalorder %s31, 1
      %p353 = por %p351, %p352
      %p355 = scmp.ne.s32.totalorder %s340, %s354
      %p356 = scmp.eq.s32.totalorder %s31, 0
      %p357 = por %p355, %p356
      %s359 = sadd.s32 %s358, 1
      %p362 = scmp.eq.s32.totalorder %s25, 1
      %p363 = scmp.ne.s32.totalorder %s358, %s360
      %p364 = scmp.eq.s32.totalorder %s25, 0
      %p365 = por %p363, %p364
      %p366 = scmp.ne.s32.totalorder %s358, %s360
      %p367 = scmp.eq.s32.totalorder %s30, 1
      %p368 = por %p366, %p367
      %p369 = scmp.ne.s32.totalorder %s360, %s361
      %p370 = scmp.eq.s32.totalorder %s30, 0
      %p371 = por %p369, %p370
      %p372 = scmp.ne.s32.totalorder %s360, %s361
      %p373 = scmp.eq.s32.totalorder %s31, 1
      %p374 = por %p372, %p373
      %p376 = scmp.ne.s32.totalorder %s361, %s375
      %p377 = scmp.eq.s32.totalorder %s31, 0
      %p378 = por %p376, %p377
      %s379 = ssub.s32 %s25, %s32
      %p380 = scmp.eq.s32.totalorder %s379, 0
      %s382 = sadd.s32 %s381, 1
      %s383 = scalar_select %p380, %s381, %s382
      %p386 = pneg %p380
      %p387 = scmp.eq.s32.totalorder %s25, 1
      %p388 = por %p386, %p387
      %p389 = scmp.ne.s32.totalorder %s381, %s384
      %p390 = scmp.eq.s32.totalorder %s25, 0
      %p391 = por %p389, %p390
      %p392 = scmp.ne.s32.totalorder %s381, %s384
      %p393 = scmp.eq.s32.totalorder %s30, 1
      %p394 = por %p392, %p393
      %p395 = scmp.ne.s32.totalorder %s384, %s385
      %p396 = scmp.eq.s32.totalorder %s30, 0
      %p397 = por %p395, %p396
      %p398 = scmp.ne.s32.totalorder %s384, %s385
      %p399 = scmp.eq.s32.totalorder %s31, 1
      %p400 = por %p398, %p399
      %p402 = scmp.ne.s32.totalorder %s385, %s401
      %p403 = scmp.eq.s32.totalorder %s31, 0
      %p404 = por %p402, %p403
      %p405 = scmp.le.s32.totalorder 1, %s25
      %p406 = scmp.lt.s32.totalorder %s25, 3
      %p407 = pnand %p405, %p406
      %p408 = pneg %p407
      // Predicated region
      $region9: #{tpu_custom_call.1} parent=5 // pred_check
        _
      $region10: #{tpu_custom_call.1} parent=5 // pred_check_branch
        %410 = sbr.rel (%p407) target = $region12
      $region11: #{tpu_custom_call.1} parent=5 // pred_region
        %s411 = ssub.s32 %s25, 1
        // Predicated region
        $region13: #{tpu_custom_call.1} parent=11 // pred_check
          %p412 = pneg %p98
        $region14: #{tpu_custom_call.1} parent=11 // pred_check_branch
          %414 = sbr.rel (%p412) target = $region16
        $region15: #{tpu_custom_call.1} parent=11 // pred_region
          _
        $region16: #{tpu_custom_call.1} parent=11 // pred_fallthru
          _
        // Predicated region
        $region17: #{tpu_custom_call.1} parent=11 // pred_check
          %p415 = pneg %p119
        $region18: #{tpu_custom_call.1} parent=11 // pred_check_branch
          %417 = sbr.rel (%p415) target = $region20
        $region19: #{tpu_custom_call.1} parent=11 // pred_region
          _
        $region20: #{tpu_custom_call.1} parent=11 // pred_fallthru
          _
        // Predicated region
        $region21: #{tpu_custom_call.1} parent=11 // pred_check
          %p418 = pneg %p140
        $region22: #{tpu_custom_call.1} parent=11 // pred_check_branch
          %420 = sbr.rel (%p418) target = $region24
        $region23: #{tpu_custom_call.1} parent=11 // pred_region
          _
        $region24: #{tpu_custom_call.1} parent=11 // pred_fallthru
          _
        // Predicated region
        $region25: #{tpu_custom_call.1} parent=11 // pred_check
          %p421 = pneg %p161
        $region26: #{tpu_custom_call.1} parent=11 // pred_check_branch
          %423 = sbr.rel (%p421) target = $region28
        $region27: #{tpu_custom_call.1} parent=11 // pred_region
          _
        $region28: #{tpu_custom_call.1} parent=11 // pred_fallthru
          _
        // Predicated region
        $region29: #{tpu_custom_call.1} parent=11 // pred_check
          %p424 = pneg %p182
        $region30: #{tpu_custom_call.1} parent=11 // pred_check_branch
          %426 = sbr.rel (%p424) target = $region32
        $region31: #{tpu_custom_call.1} parent=11 // pred_region
          _
        $region32: #{tpu_custom_call.1} parent=11 // pred_fallthru
          _
        // Predicated region
        $region33: #{tpu_custom_call.1} parent=11 // pred_check
          %p427 = pneg %p203
        $region34: #{tpu_custom_call.1} parent=11 // pred_check_branch
          %429 = sbr.rel (%p427) target = $region36
        $region35: #{tpu_custom_call.1} parent=11 // pred_region
          _
        $region36: #{tpu_custom_call.1} parent=11 // pred_fallthru
          _
        // Predicated region
        $region37: #{tpu_custom_call.1} parent=11 // pred_check
          %p430 = pneg %p224
        $region38: #{tpu_custom_call.1} parent=11 // pred_check_branch
          %432 = sbr.rel (%p430) target = $region40
        $region39: #{tpu_custom_call.1} parent=11 // pred_region
          _
        $region40: #{tpu_custom_call.1} parent=11 // pred_fallthru
          _
        // Predicated region
        $region41: #{tpu_custom_call.1} parent=11 // pred_check
          %p433 = pneg %p245
        $region42: #{tpu_custom_call.1} parent=11 // pred_check_branch
          %435 = sbr.rel (%p433) target = $region44
        $region43: #{tpu_custom_call.1} parent=11 // pred_region
          _
        $region44: #{tpu_custom_call.1} parent=11 // pred_fallthru
          _
        // Predicated region
        $region45: #{tpu_custom_call.1} parent=11 // pred_check
          %p436 = pneg %p266
        $region46: #{tpu_custom_call.1} parent=11 // pred_check_branch
          %438 = sbr.rel (%p436) target = $region48
        $region47: #{tpu_custom_call.1} parent=11 // pred_region
          _
        $region48: #{tpu_custom_call.1} parent=11 // pred_fallthru
          _
        // Predicated region
        $region49: #{tpu_custom_call.1} parent=11 // pred_check
          %p439 = pneg %p287
        $region50: #{tpu_custom_call.1} parent=11 // pred_check_branch
          %441 = sbr.rel (%p439) target = $region52
        $region51: #{tpu_custom_call.1} parent=11 // pred_region
          _
        $region52: #{tpu_custom_call.1} parent=11 // pred_fallthru
          _
        // Predicated region
        $region53: #{tpu_custom_call.1} parent=11 // pred_check
          %p442 = pneg %p308
        $region54: #{tpu_custom_call.1} parent=11 // pred_check_branch
          %444 = sbr.rel (%p442) target = $region56
        $region55: #{tpu_custom_call.1} parent=11 // pred_region
          _
        $region56: #{tpu_custom_call.1} parent=11 // pred_fallthru
          _
        // Predicated region
        $region57: #{tpu_custom_call.1} parent=11 // pred_check
          %p445 = pneg %p329
        $region58: #{tpu_custom_call.1} parent=11 // pred_check_branch
          %447 = sbr.rel (%p445) target = $region60
        $region59: #{tpu_custom_call.1} parent=11 // pred_region
          _
        $region60: #{tpu_custom_call.1} parent=11 // pred_fallthru
          _
        // Predicated region
        $region61: #{tpu_custom_call.1} parent=11 // pred_check
          %p448 = pneg %p350
        $region62: #{tpu_custom_call.1} parent=11 // pred_check_branch
          %450 = sbr.rel (%p448) target = $region64
        $region63: #{tpu_custom_call.1} parent=11 // pred_region
          _
        $region64: #{tpu_custom_call.1} parent=11 // pred_fallthru
          _
        // Predicated region
        $region65: #{tpu_custom_call.1} parent=11 // pred_check
          %p451 = pneg %p371
        $region66: #{tpu_custom_call.1} parent=11 // pred_check_branch
          %453 = sbr.rel (%p451) target = $region68
        $region67: #{tpu_custom_call.1} parent=11 // pred_region
          _
        $region68: #{tpu_custom_call.1} parent=11 // pred_fallthru
          _
      $region12: #{tpu_custom_call.1} parent=5 // pred_fallthru
        _
      %p454 = scmp.lt.s32.totalorder %s25, 2
      // Predicated region
      $region69: #{tpu_custom_call.1} parent=5 // pred_check
        %p455 = pneg %p454
      $region70: #{tpu_custom_call.1} parent=5 // pred_check_branch
        %457 = sbr.rel (%p455) target = $region72
      $region71: #{tpu_custom_call.1} parent=5 // pred_region
        // Predicated region
        $region73: #{tpu_custom_call.1} parent=71 // pred_check
          %p458 = pneg %p45
        $region74: #{tpu_custom_call.1} parent=71 // pred_check_branch
          %460 = sbr.rel (%p458) target = $region76
        $region75: #{tpu_custom_call.1} parent=71 // pred_region
          %p461 = scmp.lt.s32.totalorder %s25, 1
          %s462 = scalar_select %p461, %s25, 1
          %s463 = smul.addr %s462, 2
          %s464 = smul.addr %s463, 4
          %s465 = scalar_lea.vmem %s0, %s464
        $region76: #{tpu_custom_call.1} parent=71 // pred_fallthru
          _
        // Predicated region
        $region77: #{tpu_custom_call.1} parent=71 // pred_check
          %p466 = pneg %p71
        $region78: #{tpu_custom_call.1} parent=71 // pred_check_branch
          %468 = sbr.rel (%p466) target = $region80
        $region79: #{tpu_custom_call.1} parent=71 // pred_region
          %p469 = scmp.lt.s32.totalorder %s25, 1
          %s470 = scalar_select %p469, %s25, 1
          %s471 = smul.addr %s470, 2
          %s472 = smul.addr %s471, 2
          %s473 = scalar_lea.vmem %s1, %s472
        $region80: #{tpu_custom_call.1} parent=71 // pred_fallthru
          _
      $region72: #{tpu_custom_call.1} parent=5 // pred_fallthru
        _
      %p474 = scmp.le.s32.totalorder 1, %s25
      %p475 = scmp.lt.s32.totalorder %s25, 3
      %p476 = pnand %p474, %p475
      %p477 = pneg %p476
      // Predicated region
      $region81: #{tpu_custom_call.1} parent=5 // pred_check
        _
      $region82: #{tpu_custom_call.1} parent=5 // pred_check_branch
        %479 = sbr.rel (%p476) target = $region84
      $region83: #{tpu_custom_call.1} parent=5 // pred_region
        %s480 = ssub.s32 %s25, 1
        %p481 = scmp.lt.s32.totalorder %s30, 1
        %s482 = scalar_select %p481, %s30, 1
        %s483 = smul.addr %s482, 2
        %s484 = smul.addr %s483, 4
        %s485 = scalar_lea.vmem %s0, %s484
        %p486 = pneg %p51
        %p487 = pneg %p48
        %p488 = scmp.lt.s32.totalorder %s30, 1
        %s489 = scalar_select %p488, %s30, 1
        %s490 = smul.addr %s489, 2
        %s491 = smul.addr %s490, 2
        %s492 = scalar_lea.vmem %s1, %s491
        %p493 = pneg %p77
        %p494 = pneg %p74
        %p495 = pneg %p98
        %p496 = pneg %p95
        %p497 = pneg %p119
        %p498 = pneg %p116
        %p499 = pneg %p140
        %p500 = pneg %p137
        %p501 = pneg %p161
        %p502 = pneg %p158
        %p503 = pneg %p182
        %p504 = pneg %p179
        %p505 = pneg %p203
        %p506 = pneg %p200
        %p507 = pneg %p224
        %p508 = pneg %p221
        %p509 = pneg %p245
        %p510 = pneg %p242
        %p511 = pneg %p266
        %p512 = pneg %p263
        %p513 = pneg %p287
        %p514 = pneg %p284
        %p515 = pneg %p308
        %p516 = pneg %p305
        %p517 = pneg %p329
        %p518 = pneg %p326
        %p519 = pneg %p350
        %p520 = pneg %p347
        %p521 = pneg %p371
        %p522 = pneg %p368
        %p523 = pneg %p397
        %p524 = pneg %p394
        %s525 = sand.u32 %s384, 1
        %s526 = scalar_lea.sflag [#allocation4], %s525
        %s527 = sand.u32 %s384, 1
        %s528 = smul.addr %s527, 16
        %s529 = scalar_lea.vmem [#allocation3], %s528
        %p530 = scmp.lt.s32.totalorder %s30, 1
        %s531 = scalar_select %p530, %s30, 1
        %s532 = smul.addr %s531, 2
        %s533 = smul.addr %s532, 4
        %s534 = scalar_lea.vmem %s0, %s533
        %p535 = scmp.lt.s32.totalorder %s30, 1
        %s536 = scalar_select %p535, %s30, 1
        %s537 = smul.addr %s536, 2
        %s538 = smul.addr %s537, 2
        %s539 = scalar_lea.vmem %s1, %s538
        %v541 = vld [vmem:[%s534] sm:$0xf]
        %v542 = vld [vmem:[%s534 + $0x4] sm:$0xf]
        %v543 = vld [vmem:[%s539] sm:$0x3]
        %v544 = vld [vmem:[%s539 + $0x2] sm:$0x3]
        %v545 = vunpack.c.0.s8 %v543
        %v546 = vunpack.c.0.s8 %v544
        %v547 = vcvt.s32.f32 %v545
        %v548 = vcvt.s32.f32 %v546
        %v549 = vsub.f32 %v547, 1.0
        %v550 = vsub.f32 %v548, 1.0
        %v551 = vmul.f32 %v549, 9e+15
        %v552 = vmul.f32 %v550, 9e+15
        %v553 = vld [vmem:[%s2] sm:$0xf]
        %v554 = vld [vmem:[%s2 + $0x4] sm:$0xf]
        %v555 = vld [vmem:[%s2 + $0x8] sm:$0xf]
        %v556 = vld [vmem:[%s2 + $0xc] sm:$0xf]
        %v559 = vunpack.c.l.b16 %v541
        %v560 = vunpack.c.l.b16 %v542
        %v561 = vpack.c.b16 %v560, %v559
        %v566 = vunpack.c.l.b16 %v553
        %v567 = vunpack.c.l.b16 %v554
        %v568 = vunpack.c.l.b16 %v555
        %v569 = vunpack.c.l.b16 %v556
        %v570 = vpack.c.b16 %v567, %v566
        %v571 = vpack.c.b16 %v569, %v568
        %vm574 = vcmask 261120
        %v576 = vsel %vm574, %v561, 0
        %578 = vmatprep.subr.bf16.mxu0 0
        %579 = vmatpush1.bf16.msra.mxu0 %v570
        %580 = vmatprep.subr.bf16.mxu0 0
        %581 = vmatpush1.bf16.msra.mxu0 %v571
        %582 = vmatprep.subr.bf16.mxu0 0
        %583 = vmatpush1.bf16.msra.mxu0 0
        %584 = vmatprep.subr.bf16.mxu0 0
        %585 = vmatpush1.bf16.msra.mxu0 0
        %586 = vmatprep.subr.bf16.mxu0 0
        %587 = vmatpush1.bf16.msra.mxu0 0
        %588 = vmatprep.subr.bf16.mxu0 0
        %589 = vmatpush1.bf16.msra.mxu0 0
        %590 = vmatprep.subr.bf16.mxu0 0
        %591 = vmatpush1.bf16.msra.mxu0 0
        %592 = vmatprep.subr.bf16.mxu0 0
        %593 = vmatpush1.bf16.msra.mxu0 0
        %594 = vmatprep.subr.bf16.mxu0 0
        %595 = vmatpush1.bf16.msra.mxu0 0
        %596 = vmatprep.subr.bf16.mxu0 0
        %597 = vmatpush1.bf16.msra.mxu0 0
        %598 = vmatprep.subr.bf16.mxu0 0
        %599 = vmatpush1.bf16.msra.mxu0 0
        %600 = vmatprep.subr.bf16.mxu0 0
        %601 = vmatpush1.bf16.msra.mxu0 0
        %602 = vmatprep.subr.bf16.mxu0 0
        %603 = vmatpush1.bf16.msra.mxu0 0
        %604 = vmatprep.subr.bf16.mxu0 0
        %605 = vmatpush1.bf16.msra.mxu0 0
        %606 = vmatprep.subr.bf16.mxu0 0
        %607 = vmatpush1.bf16.msra.mxu0 0
        %608 = vmatprep.subr.bf16.mxu0 0
        %609 = vmatpush1.bf16.msra.mxu0 0
        %610 = vmatprep.mubr.bf16.mxu0 0
        %611 = vmatmul.mubr.bf16.gmra.mrb[0].mxu0 %v576
        %v612 = vpop.f32.mrb[0].mxu0
        %v613 = vadd.f32 0.0, %v612
        %v614 = vpop.f32.mrb[0].mxu0
        %v615 = vpop.f32.mrb[0].mxu0
        %v616 = vadd.f32 0.0, %v615
        %v617 = vpop.f32.mrb[0].mxu0
        %618 = vdwg.mxu0
        %v619 = vpack.c.bf16 %v616, %v613
        %v620 = vld [vmem:[%s3] sm:$0xf]
        %v621 = vld [vmem:[%s3 + $0x4] sm:$0xf]
        %v622 = vld [vmem:[%s3 + $0x8] sm:$0xf]
        %v623 = vld [vmem:[%s3 + $0xc] sm:$0xf]
        %v628 = vunpack.c.l.b16 %v620
        %v629 = vunpack.c.l.b16 %v621
        %v630 = vunpack.c.l.b16 %v622
        %v631 = vunpack.c.l.b16 %v623
        %v632 = vpack.c.b16 %v629, %v628
        %v633 = vpack.c.b16 %v631, %v630
        %v637 = vsel %vm574, %v619, 0
        %639 = vmatprep.subr.bf16.mxu0 0
        %640 = vmatpush1.bf16.msra.mxu0 %v632
        %641 = vmatprep.subr.bf16.mxu0 0
        %642 = vmatpush1.bf16.msra.mxu0 %v633
        %643 = vmatprep.subr.bf16.mxu0 0
        %644 = vmatpush1.bf16.msra.mxu0 0
        %645 = vmatprep.subr.bf16.mxu0 0
        %646 = vmatpush1.bf16.msra.mxu0 0
        %647 = vmatprep.subr.bf16.mxu0 0
        %648 = vmatpush1.bf16.msra.mxu0 0
        %649 = vmatprep.subr.bf16.mxu0 0
        %650 = vmatpush1.bf16.msra.mxu0 0
        %651 = vmatprep.subr.bf16.mxu0 0
        %652 = vmatpush1.bf16.msra.mxu0 0
        %653 = vmatprep.subr.bf16.mxu0 0
        %654 = vmatpush1.bf16.msra.mxu0 0
        %655 = vmatprep.subr.bf16.mxu0 0
        %656 = vmatpush1.bf16.msra.mxu0 0
        %657 = vmatprep.subr.bf16.mxu0 0
        %658 = vmatpush1.bf16.msra.mxu0 0
        %659 = vmatprep.subr.bf16.mxu0 0
        %660 = vmatpush1.bf16.msra.mxu0 0
        %661 = vmatprep.subr.bf16.mxu0 0
        %662 = vmatpush1.bf16.msra.mxu0 0
        %663 = vmatprep.subr.bf16.mxu0 0
        %664 = vmatpush1.bf16.msra.mxu0 0
        %665 = vmatprep.subr.bf16.mxu0 0
        %666 = vmatpush1.bf16.msra.mxu0 0
        %667 = vmatprep.subr.bf16.mxu0 0
        %668 = vmatpush1.bf16.msra.mxu0 0
        %669 = vmatprep.subr.bf16.mxu0 0
        %670 = vmatpush1.bf16.msra.mxu0 0
        %671 = vmatprep.mubr.bf16.mxu0 0
        %672 = vmatmul.mubr.bf16.gmra.mrb[0].mxu0 %v637
        %v673 = vpop.f32.mrb[0].mxu0
        %v674 = vadd.f32 0.0, %v673
        %v675 = vpop.f32.mrb[0].mxu0
        %v676 = vpop.f32.mrb[0].mxu0
        %v677 = vadd.f32 0.0, %v676
        %v678 = vpop.f32.mrb[0].mxu0
        %679 = vdwg.mxu0
        %v680 = vld [vmem:[%s4] sm:$0x1]
        %v682 = vsel %vm574, %v680, 0
        %684 = vmatprep.subr.bf16.mxu0 0
        %685 = vmatpush1.bf16.xpose.msra.mxu0 %v637
        %686 = vmatprep.subr.bf16.mxu0 0
        %687 = vmatpush1.bf16.xpose.msra.mxu0 0
        %688 = vmatprep.subr.bf16.mxu0 0
        %689 = vmatpush1.bf16.xpose.msra.mxu0 0
        %690 = vmatprep.subr.bf16.mxu0 0
        %691 = vmatpush1.bf16.xpose.msra.mxu0 0
        %692 = vmatprep.subr.bf16.mxu0 0
        %693 = vmatpush1.bf16.xpose.msra.mxu0 0
        %694 = vmatprep.subr.bf16.mxu0 0
        %695 = vmatpush1.bf16.xpose.msra.mxu0 0
        %696 = vmatprep.subr.bf16.mxu0 0
        %697 = vmatpush1.bf16.xpose.msra.mxu0 0
        %698 = vmatprep.subr.bf16.mxu0 0
        %699 = vmatpush1.bf16.xpose.msra.mxu0 0
        %700 = vmatprep.subr.bf16.mxu0 0
        %701 = vmatpush1.bf16.xpose.msra.mxu0 0
        %702 = vmatprep.subr.bf16.mxu0 0
        %703 = vmatpush1.bf16.xpose.msra.mxu0 0
        %704 = vmatprep.subr.bf16.mxu0 0
        %705 = vmatpush1.bf16.xpose.msra.mxu0 0
        %706 = vmatprep.subr.bf16.mxu0 0
        %707 = vmatpush1.bf16.xpose.msra.mxu0 0
        %708 = vmatprep.subr.bf16.mxu0 0
        %709 = vmatpush1.bf16.xpose.msra.mxu0 0
        %710 = vmatprep.subr.bf16.mxu0 0
        %711 = vmatpush1.bf16.xpose.msra.mxu0 0
        %712 = vmatprep.subr.bf16.mxu0 0
        %713 = vmatpush1.bf16.xpose.msra.mxu0 0
        %714 = vmatprep.subr.bf16.mxu0 0
        %715 = vmatpush1.bf16.xpose.msra.mxu0 0
        %716 = vmatprep.mubr.bf16.mxu0 0
        %717 = vmatmul.mubr.bf16.gmra.mrb[0].mxu0 %v682
        %v718 = vpop.f32.mrb[0].mxu0
        %v719 = vadd.f32 0.0, %v718
        %v720 = vpop.f32.mrb[0].mxu0
        %v721 = vpop.f32.mrb[0].mxu0
        %v722 = vpop.f32.mrb[0].mxu0
        %723 = vdwg.mxu0
        %725 = vset.pattern.permute.xlu0 0
        %726 = vperm.xlu0 %725, %v674
        %v727 = vpop.permute.xlu0 %726
        %730 = vset.pattern.permute.xlu0 0
        %731 = vperm.xlu0 %730, %v677
        %v732 = vpop.permute.xlu0 %731
        %v734 = vlaneseq
        %v735 = vshrl.u32 %v734, 7
        %v736 = vsub.s32 0, %v735
        %v737 = vrot.slane %v719, %v736
        %v738 = vadd.f32 %v727, %v737
        %v739 = vadd.f32 %v732, %v737
        %v740 = vmul.f32 %v738, 0.2
        %v741 = vmul.f32 %v739, 0.2
        %v742 = vmax.f32 %v738, %v740
        %v743 = vmax.f32 %v739, %v741
        %v744 = vadd.f32 %v742, %v551
        %v745 = vadd.f32 %v743, %v552
        %vm746 = vcmask 130048
        %v747 = vsel %vm746, %v744, -inf
        %748 = vmax.xlane.f32.xlu0 %v747
        %v749 = vpop.xlane.xlu0 %748
        %v750 = vsel %vm746, %v745, -inf
        %751 = vmax.xlane.f32.xlu0 %v750
        %v752 = vpop.xlane.xlu0 %751
        %v753 = vsub.f32 %v744, %v749
        %v754 = vsub.f32 %v745, %v752
        %v755 = vmul.f32 %v753, 1.442695
        %v756 = vpow.pop %v755
        %v757 = vmul.f32 %v754, 1.442695
        %v758 = vpow.pop %v757
        %v759 = vsel %vm746, %v756, 0.0
        %760 = vadd.xlane.f32.xlu0 %v759
        %v761 = vpop.xlane.xlu0 %760
        %v762 = vsel %vm746, %v758, 0.0
        %763 = vadd.xlane.f32.xlu0 %v762
        %v764 = vpop.xlane.xlu0 %763
        %v765 = vrcp.pop %v761
        %v766 = vrcp.pop %v764
        %v767 = vmul.f32 %v756, %v765
        %v768 = vmul.f32 %v758, %v766
        %v769 = vpack.c.bf16 %v768, %v767
        %v771 = vsel %vm746, %v769, 0
        %773 = vmatprep.subr.bf16.mxu0 0
        %774 = vmatpush1.bf16.msra.mxu0 %v619
        %775 = vmatprep.subr.bf16.mxu0 0
        %776 = vmatpush1.bf16.msra.mxu0 0
        %777 = vmatprep.subr.bf16.mxu0 0
        %778 = vmatpush1.bf16.msra.mxu0 0
        %779 = vmatprep.subr.bf16.mxu0 0
        %780 = vmatpush1.bf16.msra.mxu0 0
        %781 = vmatprep.subr.bf16.mxu0 0
        %782 = vmatpush1.bf16.msra.mxu0 0
        %783 = vmatprep.subr.bf16.mxu0 0
        %784 = vmatpush1.bf16.msra.mxu0 0
        %785 = vmatprep.subr.bf16.mxu0 0
        %786 = vmatpush1.bf16.msra.mxu0 0
        %787 = vmatprep.subr.bf16.mxu0 0
        %788 = vmatpush1.bf16.msra.mxu0 0
        %789 = vmatprep.subr.bf16.mxu0 0
        %790 = vmatpush1.bf16.msra.mxu0 0
        %791 = vmatprep.subr.bf16.mxu0 0
        %792 = vmatpush1.bf16.msra.mxu0 0
        %793 = vmatprep.subr.bf16.mxu0 0
        %794 = vmatpush1.bf16.msra.mxu0 0
        %795 = vmatprep.subr.bf16.mxu0 0
        %796 = vmatpush1.bf16.msra.mxu0 0
        %797 = vmatprep.subr.bf16.mxu0 0
        %798 = vmatpush1.bf16.msra.mxu0 0
        %799 = vmatprep.subr.bf16.mxu0 0
        %800 = vmatpush1.bf16.msra.mxu0 0
        %801 = vmatprep.subr.bf16.mxu0 0
        %802 = vmatpush1.bf16.msra.mxu0 0
        %803 = vmatprep.subr.bf16.mxu0 0
        %804 = vmatpush1.bf16.msra.mxu0 0
        %805 = vmatprep.mubr.bf16.mxu0 0
        %806 = vmatmul.mubr.bf16.gmra.mrb[0].mxu0 %v771
        %v807 = vpop.f32.mrb[0].mxu0
        %v808 = vadd.f32 %v613, %v807
        %v809 = vpop.f32.mrb[0].mxu0
        %v810 = vpop.f32.mrb[0].mxu0
        %v811 = vadd.f32 %v616, %v810
        %v812 = vpop.f32.mrb[0].mxu0
        %813 = vdwg.mxu0
        %814 = vst.msk [vmem:[#allocation2] sm:$0xff] %vm746, %v808
        %815 = vst.msk [vmem:[#allocation2 + $0x8] sm:$0xff] %vm746, %v811
        %816 = vset.pattern.permute.xlu0 1
        %817 = vperm.xlu0 %816, %v674
        %v818 = vpop.permute.xlu0 %817
        %820 = vset.pattern.permute.xlu0 1
        %821 = vperm.xlu0 %820, %v677
        %v822 = vpop.permute.xlu0 %821
        %v824 = vlaneseq
        %v825 = vshrl.u32 %v824, 7
        %v826 = vsub.s32 1, %v825
        %v827 = vrot.slane %v719, %v826
        %v828 = vadd.f32 %v818, %v827
        %v829 = vadd.f32 %v822, %v827
        %v830 = vmul.f32 %v828, 0.2
        %v831 = vmul.f32 %v829, 0.2
        %v832 = vmax.f32 %v828, %v830
        %v833 = vmax.f32 %v829, %v831
        %v834 = vadd.f32 %v832, %v551
        %v835 = vadd.f32 %v833, %v552
        %v836 = vsel %vm746, %v834, -inf
        %837 = vmax.xlane.f32.xlu0 %v836
        %v838 = vpop.xlane.xlu0 %837
        %v839 = vsel %vm746, %v835, -inf
        %840 = vmax.xlane.f32.xlu0 %v839
        %v841 = vpop.xlane.xlu0 %840
        %v842 = vsub.f32 %v834, %v838
        %v843 = vsub.f32 %v835, %v841
        %v844 = vmul.f32 %v842, 1.442695
        %v845 = vpow.pop %v844
        %v846 = vmul.f32 %v843, 1.442695
        %v847 = vpow.pop %v846
        %v848 = vsel %vm746, %v845, 0.0
        %849 = vadd.xlane.f32.xlu0 %v848
        %v850 = vpop.xlane.xlu0 %849
        %v851 = vsel %vm746, %v847, 0.0
        %852 = vadd.xlane.f32.xlu0 %v851
        %v853 = vpop.xlane.xlu0 %852
        %v854 = vrcp.pop %v850
        %v855 = vrcp.pop %v853
        %v856 = vmul.f32 %v845, %v854
        %v857 = vmul.f32 %v847, %v855
        %v858 = vpack.c.bf16 %v857, %v856
        %860 = vrot.lane.b32.xlu0 %v619, 112
        %v861 = vpop.permute.xlu0 %860
        %865 = vrot.lane.b32.xlu0 %v613, 112
        %v866 = vpop.permute.xlu0 %865
        %867 = vrot.lane.b32.xlu0 %v616, 112
        %v868 = vpop.permute.xlu0 %867
        %v872 = vsel %vm746, %v858, 0
        %874 = vmatprep.subr.bf16.mxu0 0
        %875 = vmatpush1.bf16.msra.mxu0 %v861
        %876 = vmatprep.subr.bf16.mxu0 0
        %877 = vmatpush1.bf16.msra.mxu0 0
        %878 = vmatprep.subr.bf16.mxu0 0
        %879 = vmatpush1.bf16.msra.mxu0 0
        %880 = vmatprep.subr.bf16.mxu0 0
        %881 = vmatpush1.bf16.msra.mxu0 0
        %882 = vmatprep.subr.bf16.mxu0 0
        %883 = vmatpush1.bf16.msra.mxu0 0
        %884 = vmatprep.subr.bf16.mxu0 0
        %885 = vmatpush1.bf16.msra.mxu0 0
        %886 = vmatprep.subr.bf16.mxu0 0
        %887 = vmatpush1.bf16.msra.mxu0 0
        %888 = vmatprep.subr.bf16.mxu0 0
        %889 = vmatpush1.bf16.msra.mxu0 0
        %890 = vmatprep.subr.bf16.mxu0 0
        %891 = vmatpush1.bf16.msra.mxu0 0
        %892 = vmatprep.subr.bf16.mxu0 0
        %893 = vmatpush1.bf16.msra.mxu0 0
        %894 = vmatprep.subr.bf16.mxu0 0
        %895 = vmatpush1.bf16.msra.mxu0 0
        %896 = vmatprep.subr.bf16.mxu0 0
        %897 = vmatpush1.bf16.msra.mxu0 0
        %898 = vmatprep.subr.bf16.mxu0 0
        %899 = vmatpush1.bf16.msra.mxu0 0
        %900 = vmatprep.subr.bf16.mxu0 0
        %901 = vmatpush1.bf16.msra.mxu0 0
        %902 = vmatprep.subr.bf16.mxu0 0
        %903 = vmatpush1.bf16.msra.mxu0 0
        %904 = vmatprep.subr.bf16.mxu0 0
        %905 = vmatpush1.bf16.msra.mxu0 0
        %906 = vmatprep.mubr.bf16.mxu0 0
        %907 = vmatmul.mubr.bf16.gmra.mrb[0].mxu0 %v872
        %v908 = vpop.f32.mrb[0].mxu0
        %v909 = vadd.f32 %v866, %v908
        %v910 = vpop.f32.mrb[0].mxu0
        %v911 = vpop.f32.mrb[0].mxu0
        %v912 = vadd.f32 %v868, %v911
        %v913 = vpop.f32.mrb[0].mxu0
        %914 = vdwg.mxu0
        %917 = vrot.lane.b32.xlu0 %v909, 16
        %v918 = vpop.permute.xlu0 %917
        %919 = vrot.lane.b32.xlu0 %v912, 16
        %v920 = vpop.permute.xlu0 %919
        %vm923 = vcmask 261248
        %924 = vst.msk [vmem:[#allocation2] sm:$0xff] %vm923, %v918
        %925 = vst.msk [vmem:[#allocation2 + $0x8] sm:$0xff] %vm923, %v920
        %v926 = vld [vmem:[#allocation2] sm:$0xff]
        %v927 = vld [vmem:[#allocation2 + $0x8] sm:$0xff]
        %v928 = vld [vmem:[%s5] sm:$0xff]
        %v929 = vld [vmem:[%s5 + $0x8] sm:$0xff]
        %v930 = vld [vmem:[%s5 + $0x10] sm:$0xff]
        %v931 = vld [vmem:[%s5 + $0x18] sm:$0xff]
        %v933 = vsel %vm574, %v926, 0
        %v936 = vsel %vm574, %v927, 0
        %938 = vmatprep.subr.mxu0 0.0
        %939 = vmatpush1.msra.mxu0 %v928
        %940 = vmatprep.subr.mxu0 0.0
        %941 = vmatpush1.msra.mxu0 %v929
        %942 = vmatprep.subr.mxu0 0.0
        %943 = vmatpush1.msra.mxu0 %v930
        %944 = vmatprep.subr.mxu0 0.0
        %945 = vmatpush1.msra.mxu0 %v931
        %946 = vmatprep.subr.mxu0 0.0
        %947 = vmatpush1.msra.mxu0 0.0
        %948 = vmatprep.subr.mxu0 0.0
        %949 = vmatpush1.msra.mxu0 0.0
        %950 = vmatprep.subr.mxu0 0.0
        %951 = vmatpush1.msra.mxu0 0.0
        %952 = vmatprep.subr.mxu0 0.0
        %953 = vmatpush1.msra.mxu0 0.0
        %954 = vmatprep.subr.mxu0 0.0
        %955 = vmatpush1.msra.mxu0 0.0
        %956 = vmatprep.subr.mxu0 0.0
        %957 = vmatpush1.msra.mxu0 0.0
        %958 = vmatprep.subr.mxu0 0.0
        %959 = vmatpush1.msra.mxu0 0.0
        %960 = vmatprep.subr.mxu0 0.0
        %961 = vmatpush1.msra.mxu0 0.0
        %962 = vmatprep.subr.mxu0 0.0
        %963 = vmatpush1.msra.mxu0 0.0
        %964 = vmatprep.subr.mxu0 0.0
        %965 = vmatpush1.msra.mxu0 0.0
        %966 = vmatprep.subr.mxu0 0.0
        %967 = vmatpush1.msra.mxu0 0.0
        %968 = vmatprep.subr.mxu0 0.0
        %969 = vmatpush1.msra.mxu0 0.0
        %970 = vmatprep.subr.mxu0 0.0
        %971 = vmatpush1.msra.mxu0 0.0
        %972 = vmatprep.subr.mxu0 0.0
        %973 = vmatpush1.msra.mxu0 0.0
        %974 = vmatprep.subr.mxu0 0.0
        %975 = vmatpush1.msra.mxu0 0.0
        %976 = vmatprep.subr.mxu0 0.0
        %977 = vmatpush1.msra.mxu0 0.0
        %978 = vmatprep.subr.mxu0 0.0
        %979 = vmatpush1.msra.mxu0 0.0
        %980 = vmatprep.subr.mxu0 0.0
        %981 = vmatpush1.msra.mxu0 0.0
        %982 = vmatprep.subr.mxu0 0.0
        %983 = vmatpush1.msra.mxu0 0.0
        %984 = vmatprep.subr.mxu0 0.0
        %985 = vmatpush1.msra.mxu0 0.0
        %986 = vmatprep.subr.mxu0 0.0
        %987 = vmatpush1.msra.mxu0 0.0
        %988 = vmatprep.subr.mxu0 0.0
        %989 = vmatpush1.msra.mxu0 0.0
        %990 = vmatprep.subr.mxu0 0.0
        %991 = vmatpush1.msra.mxu0 0.0
        %992 = vmatprep.subr.mxu0 0.0
        %993 = vmatpush1.msra.mxu0 0.0
        %994 = vmatprep.subr.mxu0 0.0
        %995 = vmatpush1.msra.mxu0 0.0
        %996 = vmatprep.subr.mxu0 0.0
        %997 = vmatpush1.msra.mxu0 0.0
        %998 = vmatprep.subr.mxu0 0.0
        %999 = vmatpush1.msra.mxu0 0.0
        %1000 = vmatprep.subr.mxu0 0.0
        %1001 = vmatpush1.msra.mxu0 0.0
        %1002 = vmatprep.mubr.f32.mxu0 0.0
        %1003 = vmatmul.mubr.f32.gmra.mrb[0].mxu0 %v933
        %v1004 = vpop.f32.mrb[0].mxu0
        %v1005 = vadd.f32 0.0, %v1004
        %v1006 = vpop.f32.mrb[0].mxu0
        %1007 = vmatprep.mubr.f32.mxu0 0.0
        %1008 = vmatmul.mubr.f32.gmra.mrb[0].mxu0 %v936
        %v1009 = vpop.f32.mrb[0].mxu0
        %v1010 = vadd.f32 0.0, %v1009
        %v1011 = vpop.f32.mrb[0].mxu0
        %1012 = vdwg.mxu0
        %v1013 = vmul.f32 %v1005, 0.0625
        %v1014 = vmul.f32 %v1010, 0.0625
        %v1015 = vld [vmem:[%s6] sm:$0x3]
        %vm1016 = vcmask 15360
        %v1018 = vsel %vm1016, %v1013, 0
        %v1021 = vsel %vm1016, %v1014, 0
        %vm1023 = vcmask 1041408
        %v1025 = vsel %vm1023, %v1015, 0
        %1027 = vmatprep.subr.mxu0 0.0
        %1028 = vmatpush1.msra.mxu0 %v1025
        %1029 = vmatprep.subr.mxu0 0.0
        %1030 = vmatpush1.msra.mxu0 0.0
        %1031 = vmatprep.subr.mxu0 0.0
        %1032 = vmatpush1.msra.mxu0 0.0
        %1033 = vmatprep.subr.mxu0 0.0
        %1034 = vmatpush1.msra.mxu0 0.0
        %1035 = vmatprep.subr.mxu0 0.0
        %1036 = vmatpush1.msra.mxu0 0.0
        %1037 = vmatprep.subr.mxu0 0.0
        %1038 = vmatpush1.msra.mxu0 0.0
        %1039 = vmatprep.subr.mxu0 0.0
        %1040 = vmatpush1.msra.mxu0 0.0
        %1041 = vmatprep.subr.mxu0 0.0
        %1042 = vmatpush1.msra.mxu0 0.0
        %1043 = vmatprep.subr.mxu0 0.0
        %1044 = vmatpush1.msra.mxu0 0.0
        %1045 = vmatprep.subr.mxu0 0.0
        %1046 = vmatpush1.msra.mxu0 0.0
        %1047 = vmatprep.subr.mxu0 0.0
        %1048 = vmatpush1.msra.mxu0 0.0
        %1049 = vmatprep.subr.mxu0 0.0
        %1050 = vmatpush1.msra.mxu0 0.0
        %1051 = vmatprep.subr.mxu0 0.0
        %1052 = vmatpush1.msra.mxu0 0.0
        %1053 = vmatprep.subr.mxu0 0.0
        %1054 = vmatpush1.msra.mxu0 0.0
        %1055 = vmatprep.subr.mxu0 0.0
        %1056 = vmatpush1.msra.mxu0 0.0
        %1057 = vmatprep.subr.mxu0 0.0
        %1058 = vmatpush1.msra.mxu0 0.0
        %1059 = vmatprep.subr.mxu0 0.0
        %1060 = vmatpush1.msra.mxu0 0.0
        %1061 = vmatprep.subr.mxu0 0.0
        %1062 = vmatpush1.msra.mxu0 0.0
        %1063 = vmatprep.subr.mxu0 0.0
        %1064 = vmatpush1.msra.mxu0 0.0
        %1065 = vmatprep.subr.mxu0 0.0
        %1066 = vmatpush1.msra.mxu0 0.0
        %1067 = vmatprep.subr.mxu0 0.0
        %1068 = vmatpush1.msra.mxu0 0.0
        %1069 = vmatprep.subr.mxu0 0.0
        %1070 = vmatpush1.msra.mxu0 0.0
        %1071 = vmatprep.subr.mxu0 0.0
        %1072 = vmatpush1.msra.mxu0 0.0
        %1073 = vmatprep.subr.mxu0 0.0
        %1074 = vmatpush1.msra.mxu0 0.0
        %1075 = vmatprep.subr.mxu0 0.0
        %1076 = vmatpush1.msra.mxu0 0.0
        %1077 = vmatprep.subr.mxu0 0.0
        %1078 = vmatpush1.msra.mxu0 0.0
        %1079 = vmatprep.subr.mxu0 0.0
        %1080 = vmatpush1.msra.mxu0 0.0
        %1081 = vmatprep.subr.mxu0 0.0
        %1082 = vmatpush1.msra.mxu0 0.0
        %1083 = vmatprep.subr.mxu0 0.0
        %1084 = vmatpush1.msra.mxu0 0.0
        %1085 = vmatprep.subr.mxu0 0.0
        %1086 = vmatpush1.msra.mxu0 0.0
        %1087 = vmatprep.subr.mxu0 0.0
        %1088 = vmatpush1.msra.mxu0 0.0
        %1089 = vmatprep.subr.mxu0 0.0
        %1090 = vmatpush1.msra.mxu0 0.0
        %1091 = vmatprep.mubr.f32.mxu0 0.0
        %1092 = vmatmul.mubr.f32.gmra.mrb[0].mxu0 %v1018
        %v1093 = vpop.f32.mrb[0].mxu0
        %v1094 = vadd.f32 0.0, %v1093
        %v1095 = vpop.f32.mrb[0].mxu0
        %1096 = vmatprep.mubr.f32.mxu0 0.0
        %1097 = vmatmul.mubr.f32.gmra.mrb[0].mxu0 %v1021
        %v1098 = vpop.f32.mrb[0].mxu0
        %v1099 = vadd.f32 0.0, %v1098
        %v1100 = vpop.f32.mrb[0].mxu0
        %1101 = vdwg.mxu0
        %v1102 = vsub.f32 %v926, %v1094
        %v1103 = vsub.f32 %v927, %v1099
        %v1104 = vmul.f32 %v1102, %v1102
        %v1105 = vmul.f32 %v1103, %v1103
        %v1107 = vsel %vm574, %v1104, 0
        %v1110 = vsel %vm574, %v1105, 0
        %1112 = vmatprep.subr.mxu0 0.0
        %1113 = vmatpush1.msra.mxu0 %v928
        %1114 = vmatprep.subr.mxu0 0.0
        %1115 = vmatpush1.msra.mxu0 %v929
        %1116 = vmatprep.subr.mxu0 0.0
        %1117 = vmatpush1.msra.mxu0 %v930
        %1118 = vmatprep.subr.mxu0 0.0
        %1119 = vmatpush1.msra.mxu0 %v931
        %1120 = vmatprep.subr.mxu0 0.0
        %1121 = vmatpush1.msra.mxu0 0.0
        %1122 = vmatprep.subr.mxu0 0.0
        %1123 = vmatpush1.msra.mxu0 0.0
        %1124 = vmatprep.subr.mxu0 0.0
        %1125 = vmatpush1.msra.mxu0 0.0
        %1126 = vmatprep.subr.mxu0 0.0
        %1127 = vmatpush1.msra.mxu0 0.0
        %1128 = vmatprep.subr.mxu0 0.0
        %1129 = vmatpush1.msra.mxu0 0.0
        %1130 = vmatprep.subr.mxu0 0.0
        %1131 = vmatpush1.msra.mxu0 0.0
        %1132 = vmatprep.subr.mxu0 0.0
        %1133 = vmatpush1.msra.mxu0 0.0
        %1134 = vmatprep.subr.mxu0 0.0
        %1135 = vmatpush1.msra.mxu0 0.0
        %1136 = vmatprep.subr.mxu0 0.0
        %1137 = vmatpush1.msra.mxu0 0.0
        %1138 = vmatprep.subr.mxu0 0.0
        %1139 = vmatpush1.msra.mxu0 0.0
        %1140 = vmatprep.subr.mxu0 0.0
        %1141 = vmatpush1.msra.mxu0 0.0
        %1142 = vmatprep.subr.mxu0 0.0
        %1143 = vmatpush1.msra.mxu0 0.0
        %1144 = vmatprep.subr.mxu0 0.0
        %1145 = vmatpush1.msra.mxu0 0.0
        %1146 = vmatprep.subr.mxu0 0.0
        %1147 = vmatpush1.msra.mxu0 0.0
        %1148 = vmatprep.subr.mxu0 0.0
        %1149 = vmatpush1.msra.mxu0 0.0
        %1150 = vmatprep.subr.mxu0 0.0
        %1151 = vmatpush1.msra.mxu0 0.0
        %1152 = vmatprep.subr.mxu0 0.0
        %1153 = vmatpush1.msra.mxu0 0.0
        %1154 = vmatprep.subr.mxu0 0.0
        %1155 = vmatpush1.msra.mxu0 0.0
        %1156 = vmatprep.subr.mxu0 0.0
        %1157 = vmatpush1.msra.mxu0 0.0
        %1158 = vmatprep.subr.mxu0 0.0
        %1159 = vmatpush1.msra.mxu0 0.0
        %1160 = vmatprep.subr.mxu0 0.0
        %1161 = vmatpush1.msra.mxu0 0.0
        %1162 = vmatprep.subr.mxu0 0.0
        %1163 = vmatpush1.msra.mxu0 0.0
        %1164 = vmatprep.subr.mxu0 0.0
        %1165 = vmatpush1.msra.mxu0 0.0
        %1166 = vmatprep.subr.mxu0 0.0
        %1167 = vmatpush1.msra.mxu0 0.0
        %1168 = vmatprep.subr.mxu0 0.0
        %1169 = vmatpush1.msra.mxu0 0.0
        %1170 = vmatprep.subr.mxu0 0.0
        %1171 = vmatpush1.msra.mxu0 0.0
        %1172 = vmatprep.subr.mxu0 0.0
        %1173 = vmatpush1.msra.mxu0 0.0
        %1174 = vmatprep.subr.mxu0 0.0
        %1175 = vmatpush1.msra.mxu0 0.0
        %1176 = vmatprep.mubr.f32.mxu0 0.0
        %1177 = vmatmul.mubr.f32.gmra.mrb[0].mxu0 %v1107
        %v1178 = vpop.f32.mrb[0].mxu0
        %v1179 = vadd.f32 0.0, %v1178
        %v1180 = vpop.f32.mrb[0].mxu0
        %1181 = vmatprep.mubr.f32.mxu0 0.0
        %1182 = vmatmul.mubr.f32.gmra.mrb[0].mxu0 %v1110
        %v1183 = vpop.f32.mrb[0].mxu0
        %v1184 = vadd.f32 0.0, %v1183
        %v1185 = vpop.f32.mrb[0].mxu0
        %1186 = vdwg.mxu0
        %v1187 = vmul.f32 %v1179, 0.0625
        %v1188 = vmul.f32 %v1184, 0.0625
        %v1189 = vadd.f32 %v1187, 1e-05
        %v1190 = vadd.f32 %v1188, 1e-05
        %v1191 = vrsqrt.pop %v1189
        %v1192 = vrsqrt.pop %v1190
        %v1194 = vsel %vm1016, %v1191, 0
        %v1197 = vsel %vm1016, %v1192, 0
        %1199 = vmatprep.subr.mxu0 0.0
        %1200 = vmatpush1.msra.mxu0 %v1025
        %1201 = vmatprep.subr.mxu0 0.0
        %1202 = vmatpush1.msra.mxu0 0.0
        %1203 = vmatprep.subr.mxu0 0.0
        %1204 = vmatpush1.msra.mxu0 0.0
        %1205 = vmatprep.subr.mxu0 0.0
        %1206 = vmatpush1.msra.mxu0 0.0
        %1207 = vmatprep.subr.mxu0 0.0
        %1208 = vmatpush1.msra.mxu0 0.0
        %1209 = vmatprep.subr.mxu0 0.0
        %1210 = vmatpush1.msra.mxu0 0.0
        %1211 = vmatprep.subr.mxu0 0.0
        %1212 = vmatpush1.msra.mxu0 0.0
        %1213 = vmatprep.subr.mxu0 0.0
        %1214 = vmatpush1.msra.mxu0 0.0
        %1215 = vmatprep.subr.mxu0 0.0
        %1216 = vmatpush1.msra.mxu0 0.0
        %1217 = vmatprep.subr.mxu0 0.0
        %1218 = vmatpush1.msra.mxu0 0.0
        %1219 = vmatprep.subr.mxu0 0.0
        %1220 = vmatpush1.msra.mxu0 0.0
        %1221 = vmatprep.subr.mxu0 0.0
        %1222 = vmatpush1.msra.mxu0 0.0
        %1223 = vmatprep.subr.mxu0 0.0
        %1224 = vmatpush1.msra.mxu0 0.0
        %1225 = vmatprep.subr.mxu0 0.0
        %1226 = vmatpush1.msra.mxu0 0.0
        %1227 = vmatprep.subr.mxu0 0.0
        %1228 = vmatpush1.msra.mxu0 0.0
        %1229 = vmatprep.subr.mxu0 0.0
        %1230 = vmatpush1.msra.mxu0 0.0
        %1231 = vmatprep.subr.mxu0 0.0
        %1232 = vmatpush1.msra.mxu0 0.0
        %1233 = vmatprep.subr.mxu0 0.0
        %1234 = vmatpush1.msra.mxu0 0.0
        %1235 = vmatprep.subr.mxu0 0.0
        %1236 = vmatpush1.msra.mxu0 0.0
        %1237 = vmatprep.subr.mxu0 0.0
        %1238 = vmatpush1.msra.mxu0 0.0
        %1239 = vmatprep.subr.mxu0 0.0
        %1240 = vmatpush1.msra.mxu0 0.0
        %1241 = vmatprep.subr.mxu0 0.0
        %1242 = vmatpush1.msra.mxu0 0.0
        %1243 = vmatprep.subr.mxu0 0.0
        %1244 = vmatpush1.msra.mxu0 0.0
        %1245 = vmatprep.subr.mxu0 0.0
        %1246 = vmatpush1.msra.mxu0 0.0
        %1247 = vmatprep.subr.mxu0 0.0
        %1248 = vmatpush1.msra.mxu0 0.0
        %1249 = vmatprep.subr.mxu0 0.0
        %1250 = vmatpush1.msra.mxu0 0.0
        %1251 = vmatprep.subr.mxu0 0.0
        %1252 = vmatpush1.msra.mxu0 0.0
        %1253 = vmatprep.subr.mxu0 0.0
        %1254 = vmatpush1.msra.mxu0 0.0
        %1255 = vmatprep.subr.mxu0 0.0
        %1256 = vmatpush1.msra.mxu0 0.0
        %1257 = vmatprep.subr.mxu0 0.0
        %1258 = vmatpush1.msra.mxu0 0.0
        %1259 = vmatprep.subr.mxu0 0.0
        %1260 = vmatpush1.msra.mxu0 0.0
        %1261 = vmatprep.subr.mxu0 0.0
        %1262 = vmatpush1.msra.mxu0 0.0
        %1263 = vmatprep.mubr.f32.mxu0 0.0
        %1264 = vmatmul.mubr.f32.gmra.mrb[0].mxu0 %v1194
        %v1265 = vpop.f32.mrb[0].mxu0
        %v1266 = vadd.f32 0.0, %v1265
        %v1267 = vpop.f32.mrb[0].mxu0
        %1268 = vmatprep.mubr.f32.mxu0 0.0
        %1269 = vmatmul.mubr.f32.gmra.mrb[0].mxu0 %v1197
        %v1270 = vpop.f32.mrb[0].mxu0
        %v1271 = vadd.f32 0.0, %v1270
        %v1272 = vpop.f32.mrb[0].mxu0
        %1273 = vdwg.mxu0
        %v1274 = vmul.f32 %v1102, %v1266
        %v1275 = vmul.f32 %v1103, %v1271
        %v1276 = vld [vmem:[%s7] sm:$0x1]
        %v1278 = vlaneseq
        %v1279 = vshrl.u32 %v1278, 7
        %v1280 = vsub.s32 0, %v1279
        %v1281 = vrot.slane %v1276, %v1280
        %v1283 = vmul.f32 %v1274, %v1281
        %v1284 = vmul.f32 %v1275, %v1281
        %v1285 = vld [vmem:[%s8] sm:$0x1]
        %v1287 = vlaneseq
        %v1288 = vshrl.u32 %v1287, 7
        %v1289 = vsub.s32 0, %v1288
        %v1290 = vrot.slane %v1285, %v1289
        %v1292 = vadd.f32 %v1283, %v1290
        %v1293 = vadd.f32 %v1284, %v1290
        %vm1294 = vcmp.gt.f32.partialorder %v1292, 0.0
        %vm1295 = vcmp.gt.f32.partialorder %v1293, 0.0
        %v1296 = vmul.f32 %v1292, 1.442695
        %v1297 = vpow.pop %v1296
        %v1298 = vmul.f32 %v1293, 1.442695
        %v1299 = vpow.pop %v1298
        %v1300 = vsub.f32 %v1297, 1.0
        %v1301 = vsub.f32 %v1299, 1.0
        %v1302 = vsel %vm1294, %v1292, %v1300
        %v1303 = vsel %vm1295, %v1293, %v1301
        %v1304 = vsel %vm574, %v1302, 0.0
        %1305 = vadd.xlane.f32.xlu0 %v1304
        %v1306 = vpop.xlane.xlu0 %1305
        %v1307 = vsel %vm574, %v1303, 0.0
        %1308 = vadd.xlane.f32.xlu0 %v1307
        %v1309 = vpop.xlane.xlu0 %1308
        %v1310 = vrcp.pop 32.0
        %v1311 = vmul.f32 %v1306, %v1310
        %v1312 = vmul.f32 %v1309, %v1310
        %v1313 = vsub.f32 %v1302, %v1311
        %v1314 = vsub.f32 %v1303, %v1312
        %v1315 = vmul.f32 %v1313, %v1313
        %v1316 = vmul.f32 %v1314, %v1314
        %v1317 = vsel %vm574, %v1315, 0.0
        %1318 = vadd.xlane.f32.xlu0 %v1317
        %v1319 = vpop.xlane.xlu0 %1318
        %v1320 = vsel %vm574, %v1316, 0.0
        %1321 = vadd.xlane.f32.xlu0 %v1320
        %v1322 = vpop.xlane.xlu0 %1321
        %v1323 = vmul.f32 %v1319, %v1310
        %v1324 = vmul.f32 %v1322, %v1310
        %v1325 = vadd.f32 %v1323, 1e-05
        %v1326 = vadd.f32 %v1324, 1e-05
        %v1327 = vrsqrt.pop %v1325
        %v1328 = vrsqrt.pop %v1326
        %v1329 = vmul.f32 %v1313, %v1327
        %v1330 = vmul.f32 %v1314, %v1328
        %v1331 = vld [vmem:[%s9] sm:$0x1]
        %v1333 = vlaneseq
        %v1334 = vshrl.u32 %v1333, 7
        %v1335 = vsub.s32 0, %v1334
        %v1336 = vrot.slane %v1331, %v1335
        %v1338 = vmul.f32 %v1329, %v1336
        %v1339 = vmul.f32 %v1330, %v1336
        %v1340 = vld [vmem:[%s10] sm:$0x1]
        %v1342 = vlaneseq
        %v1343 = vshrl.u32 %v1342, 7
        %v1344 = vsub.s32 0, %v1343
        %v1345 = vrot.slane %v1340, %v1344
        %v1347 = vadd.f32 %v1338, %v1345
        %v1348 = vadd.f32 %v1339, %v1345
        %v1349 = vpack.c.bf16 %v1348, %v1347
        %v1350 = vld [vmem:[%s11] sm:$0xf]
        %v1351 = vld [vmem:[%s11 + $0x4] sm:$0xf]
        %v1352 = vld [vmem:[%s11 + $0x8] sm:$0xf]
        %v1353 = vld [vmem:[%s11 + $0xc] sm:$0xf]
        %v1358 = vunpack.c.l.b16 %v1350
        %v1359 = vunpack.c.l.b16 %v1351
        %v1360 = vunpack.c.l.b16 %v1352
        %v1361 = vunpack.c.l.b16 %v1353
        %v1362 = vpack.c.b16 %v1359, %v1358
        %v1363 = vpack.c.b16 %v1361, %v1360
        %v1367 = vsel %vm574, %v1349, 0
        %1369 = vmatprep.subr.bf16.mxu0 0
        %1370 = vmatpush1.bf16.msra.mxu0 %v1362
        %1371 = vmatprep.subr.bf16.mxu0 0
        %1372 = vmatpush1.bf16.msra.mxu0 %v1363
        %1373 = vmatprep.subr.bf16.mxu0 0
        %1374 = vmatpush1.bf16.msra.mxu0 0
        %1375 = vmatprep.subr.bf16.mxu0 0
        %1376 = vmatpush1.bf16.msra.mxu0 0
        %1377 = vmatprep.subr.bf16.mxu0 0
        %1378 = vmatpush1.bf16.msra.mxu0 0
        %1379 = vmatprep.subr.bf16.mxu0 0
        %1380 = vmatpush1.bf16.msra.mxu0 0
        %1381 = vmatprep.subr.bf16.mxu0 0
        %1382 = vmatpush1.bf16.msra.mxu0 0
        %1383 = vmatprep.subr.bf16.mxu0 0
        %1384 = vmatpush1.bf16.msra.mxu0 0
        %1385 = vmatprep.subr.bf16.mxu0 0
        %1386 = vmatpush1.bf16.msra.mxu0 0
        %1387 = vmatprep.subr.bf16.mxu0 0
        %1388 = vmatpush1.bf16.msra.mxu0 0
        %1389 = vmatprep.subr.bf16.mxu0 0
        %1390 = vmatpush1.bf16.msra.mxu0 0
        %1391 = vmatprep.subr.bf16.mxu0 0
        %1392 = vmatpush1.bf16.msra.mxu0 0
        %1393 = vmatprep.subr.bf16.mxu0 0
        %1394 = vmatpush1.bf16.msra.mxu0 0
        %1395 = vmatprep.subr.bf16.mxu0 0
        %1396 = vmatpush1.bf16.msra.mxu0 0
        %1397 = vmatprep.subr.bf16.mxu0 0
        %1398 = vmatpush1.bf16.msra.mxu0 0
        %1399 = vmatprep.subr.bf16.mxu0 0
        %1400 = vmatpush1.bf16.msra.mxu0 0
        %1401 = vmatprep.mubr.bf16.mxu0 0
        %1402 = vmatmul.mubr.bf16.gmra.mrb[0].mxu0 %v1367
        %v1403 = vpop.f32.mrb[0].mxu0
        %v1404 = vadd.f32 0.0, %v1403
        %v1405 = vpop.f32.mrb[0].mxu0
        %v1406 = vpop.f32.mrb[0].mxu0
        %v1407 = vadd.f32 0.0, %v1406
        %v1408 = vpop.f32.mrb[0].mxu0
        %1409 = vdwg.mxu0
        %v1410 = vpack.c.bf16 %v1407, %v1404
        %v1411 = vld [vmem:[%s12] sm:$0x1]
        %v1413 = vlaneseq
        %v1414 = vshrl.u32 %v1413, 7
        %v1415 = vsub.s32 0, %v1414
        %v1416 = vrot.slane %v1411, %v1415
        %v1418 = vmul.f32 %v1404, %v1416
        %v1419 = vmul.f32 %v1407, %v1416
        %vm1420 = vcmask 64512
        %v1421 = vsel %vm1420, %v1418, 0.0
        %1422 = vadd.xlane.f32.xlu0 %v1421
        %v1423 = vpop.xlane.xlu0 %1422
        %v1424 = vsel %vm1420, %v1419, 0.0
        %1425 = vadd.xlane.f32.xlu0 %v1424
        %v1426 = vpop.xlane.xlu0 %1425
        %v1427 = vld [vmem:[%s13] sm:$0x1]
        %v1429 = vsel %vm1420, %v1427, 0
        %v1432 = vsel %vm1420, %v1404, 0
        %v1435 = vsel %vm1420, %v1407, 0
        %1437 = vmatprep.subr.mxu0 0.0
        %1438 = vmatpush1.xpose.msra.mxu0 %v1432
        %1439 = vmatprep.subr.mxu0 0.0
        %1440 = vmatpush1.xpose.msra.mxu0 %v1435
        %1441 = vmatprep.subr.mxu0 0.0
        %1442 = vmatpush1.xpose.msra.mxu0 0.0
        %1443 = vmatprep.subr.mxu0 0.0
        %1444 = vmatpush1.xpose.msra.mxu0 0.0
        %1445 = vmatprep.subr.mxu0 0.0
        %1446 = vmatpush1.xpose.msra.mxu0 0.0
        %1447 = vmatprep.subr.mxu0 0.0
        %1448 = vmatpush1.xpose.msra.mxu0 0.0
        %1449 = vmatprep.subr.mxu0 0.0
        %1450 = vmatpush1.xpose.msra.mxu0 0.0
        %1451 = vmatprep.subr.mxu0 0.0
        %1452 = vmatpush1.xpose.msra.mxu0 0.0
        %1453 = vmatprep.subr.mxu0 0.0
        %1454 = vmatpush1.xpose.msra.mxu0 0.0
        %1455 = vmatprep.subr.mxu0 0.0
        %1456 = vmatpush1.xpose.msra.mxu0 0.0
        %1457 = vmatprep.subr.mxu0 0.0
        %1458 = vmatpush1.xpose.msra.mxu0 0.0
        %1459 = vmatprep.subr.mxu0 0.0
        %1460 = vmatpush1.xpose.msra.mxu0 0.0
        %1461 = vmatprep.subr.mxu0 0.0
        %1462 = vmatpush1.xpose.msra.mxu0 0.0
        %1463 = vmatprep.subr.mxu0 0.0
        %1464 = vmatpush1.xpose.msra.mxu0 0.0
        %1465 = vmatprep.subr.mxu0 0.0
        %1466 = vmatpush1.xpose.msra.mxu0 0.0
        %1467 = vmatprep.subr.mxu0 0.0
        %1468 = vmatpush1.xpose.msra.mxu0 0.0
        %1469 = vmatprep.subr.mxu0 0.0
        %1470 = vmatpush1.xpose.msra.mxu0 0.0
        %1471 = vmatprep.subr.mxu0 0.0
        %1472 = vmatpush1.xpose.msra.mxu0 0.0
        %1473 = vmatprep.subr.mxu0 0.0
        %1474 = vmatpush1.xpose.msra.mxu0 0.0
        %1475 = vmatprep.subr.mxu0 0.0
        %1476 = vmatpush1.xpose.msra.mxu0 0.0
        %1477 = vmatprep.subr.mxu0 0.0
        %1478 = vmatpush1.xpose.msra.mxu0 0.0
        %1479 = vmatprep.subr.mxu0 0.0
        %1480 = vmatpush1.xpose.msra.mxu0 0.0
        %1481 = vmatprep.subr.mxu0 0.0
        %1482 = vmatpush1.xpose.msra.mxu0 0.0
        %1483 = vmatprep.subr.mxu0 0.0
        %1484 = vmatpush1.xpose.msra.mxu0 0.0
        %1485 = vmatprep.subr.mxu0 0.0
        %1486 = vmatpush1.xpose.msra.mxu0 0.0
        %1487 = vmatprep.subr.mxu0 0.0
        %1488 = vmatpush1.xpose.msra.mxu0 0.0
        %1489 = vmatprep.subr.mxu0 0.0
        %1490 = vmatpush1.xpose.msra.mxu0 0.0
        %1491 = vmatprep.subr.mxu0 0.0
        %1492 = vmatpush1.xpose.msra.mxu0 0.0
        %1493 = vmatprep.subr.mxu0 0.0
        %1494 = vmatpush1.xpose.msra.mxu0 0.0
        %1495 = vmatprep.subr.mxu0 0.0
        %1496 = vmatpush1.xpose.msra.mxu0 0.0
        %1497 = vmatprep.subr.mxu0 0.0
        %1498 = vmatpush1.xpose.msra.mxu0 0.0
        %1499 = vmatprep.subr.mxu0 0.0
        %1500 = vmatpush1.xpose.msra.mxu0 0.0
        %1501 = vmatprep.mubr.f32.mxu0 0.0
        %1502 = vmatmul.mubr.f32.gmra.mrb[0].mxu0 %v1429
        %v1503 = vpop.f32.mrb[0].mxu0
        %v1504 = vadd.f32 0.0, %v1503
        %v1505 = vpop.f32.mrb[0].mxu0
        %1506 = vdwg.mxu0
        %v1507 = vlaneseq
        %v1508 = vshrl.u32 %v1507, 7
        %v1509 = vsub.s32 0, %v1508
        %v1510 = vrot.slane %v1504, %v1509
        %v1511 = vadd.f32 %v1423, %v1510
        %v1512 = vadd.f32 %v1426, %v1510
        %v1513 = vmul.f32 %v1511, 0.2
        %v1514 = vmul.f32 %v1512, 0.2
        %v1515 = vmax.f32 %v1511, %v1513
        %v1516 = vmax.f32 %v1512, %v1514
        %v1517 = vadd.f32 %v1515, %v551
        %v1518 = vadd.f32 %v1516, %v552
        %v1519 = vsel %vm746, %v1517, -inf
        %1520 = vmax.xlane.f32.xlu0 %v1519
        %v1521 = vpop.xlane.xlu0 %1520
        %v1522 = vsel %vm746, %v1518, -inf
        %1523 = vmax.xlane.f32.xlu0 %v1522
        %v1524 = vpop.xlane.xlu0 %1523
        %v1525 = vsub.f32 %v1517, %v1521
        %v1526 = vsub.f32 %v1518, %v1524
        %v1527 = vmul.f32 %v1525, 1.442695
        %v1528 = vpow.pop %v1527
        %v1529 = vmul.f32 %v1526, 1.442695
        %v1530 = vpow.pop %v1529
        %v1531 = vsel %vm746, %v1528, 0.0
        %1532 = vadd.xlane.f32.xlu0 %v1531
        %v1533 = vpop.xlane.xlu0 %1532
        %v1534 = vsel %vm746, %v1530, 0.0
        %1535 = vadd.xlane.f32.xlu0 %v1534
        %v1536 = vpop.xlane.xlu0 %1535
        %v1537 = vrcp.pop %v1533
        %v1538 = vrcp.pop %v1536
        %v1539 = vmul.f32 %v1528, %v1537
        %v1540 = vmul.f32 %v1530, %v1538
        %v1541 = vpack.c.bf16 %v1540, %v1539
        %v1543 = vsel %vm746, %v1541, 0
        %1545 = vmatprep.subr.bf16.mxu0 0
        %1546 = vmatpush1.bf16.msra.mxu0 %v1410
        %1547 = vmatprep.subr.bf16.mxu0 0
        %1548 = vmatpush1.bf16.msra.mxu0 0
        %1549 = vmatprep.subr.bf16.mxu0 0
        %1550 = vmatpush1.bf16.msra.mxu0 0
        %1551 = vmatprep.subr.bf16.mxu0 0
        %1552 = vmatpush1.bf16.msra.mxu0 0
        %1553 = vmatprep.subr.bf16.mxu0 0
        %1554 = vmatpush1.bf16.msra.mxu0 0
        %1555 = vmatprep.subr.bf16.mxu0 0
        %1556 = vmatpush1.bf16.msra.mxu0 0
        %1557 = vmatprep.subr.bf16.mxu0 0
        %1558 = vmatpush1.bf16.msra.mxu0 0
        %1559 = vmatprep.subr.bf16.mxu0 0
        %1560 = vmatpush1.bf16.msra.mxu0 0
        %1561 = vmatprep.subr.bf16.mxu0 0
        %1562 = vmatpush1.bf16.msra.mxu0 0
        %1563 = vmatprep.subr.bf16.mxu0 0
        %1564 = vmatpush1.bf16.msra.mxu0 0
        %1565 = vmatprep.subr.bf16.mxu0 0
        %1566 = vmatpush1.bf16.msra.mxu0 0
        %1567 = vmatprep.subr.bf16.mxu0 0
        %1568 = vmatpush1.bf16.msra.mxu0 0
        %1569 = vmatprep.subr.bf16.mxu0 0
        %1570 = vmatpush1.bf16.msra.mxu0 0
        %1571 = vmatprep.subr.bf16.mxu0 0
        %1572 = vmatpush1.bf16.msra.mxu0 0
        %1573 = vmatprep.subr.bf16.mxu0 0
        %1574 = vmatpush1.bf16.msra.mxu0 0
        %1575 = vmatprep.subr.bf16.mxu0 0
        %1576 = vmatpush1.bf16.msra.mxu0 0
        %1577 = vmatprep.mubr.bf16.mxu0 0
        %1578 = vmatmul.mubr.bf16.gmra.mrb[0].mxu0 %v1543
        %v1579 = vpop.f32.mrb[0].mxu0
        %v1580 = vadd.f32 %v1404, %v1579
        %v1581 = vpop.f32.mrb[0].mxu0
        %v1582 = vpop.f32.mrb[0].mxu0
        %v1583 = vadd.f32 %v1407, %v1582
        %v1584 = vpop.f32.mrb[0].mxu0
        %1585 = vdwg.mxu0
        %v1586 = vsel %vm1420, %v1580, 0.0
        %1587 = vadd.xlane.f32.xlu0 %v1586
        %v1588 = vpop.xlane.xlu0 %1587
        %v1589 = vsel %vm1420, %v1583, 0.0
        %1590 = vadd.xlane.f32.xlu0 %v1589
        %v1591 = vpop.xlane.xlu0 %1590
        %v1592 = vrcp.pop 8.0
        %v1593 = vmul.f32 %v1588, %v1592
        %v1594 = vmul.f32 %v1591, %v1592
        %v1595 = vsub.f32 %v1580, %v1593
        %v1596 = vsub.f32 %v1583, %v1594
        %v1597 = vmul.f32 %v1595, %v1595
        %v1598 = vmul.f32 %v1596, %v1596
        %v1599 = vsel %vm1420, %v1597, 0.0
        %1600 = vadd.xlane.f32.xlu0 %v1599
        %v1601 = vpop.xlane.xlu0 %1600
        %v1602 = vsel %vm1420, %v1598, 0.0
        %1603 = vadd.xlane.f32.xlu0 %v1602
        %v1604 = vpop.xlane.xlu0 %1603
        %v1605 = vmul.f32 %v1601, %v1592
        %v1606 = vmul.f32 %v1604, %v1592
        %v1607 = vadd.f32 %v1605, 1e-05
        %v1608 = vadd.f32 %v1606, 1e-05
        %v1609 = vrsqrt.pop %v1607
        %v1610 = vrsqrt.pop %v1608
        %v1611 = vmul.f32 %v1595, %v1609
        %v1612 = vmul.f32 %v1596, %v1610
        %v1613 = vld [vmem:[%s14] sm:$0x1]
        %v1615 = vlaneseq
        %v1616 = vshrl.u32 %v1615, 7
        %v1617 = vsub.s32 0, %v1616
        %v1618 = vrot.slane %v1613, %v1617
        %v1620 = vmul.f32 %v1611, %v1618
        %v1621 = vmul.f32 %v1612, %v1618
        %v1622 = vld [vmem:[%s15] sm:$0x1]
        %v1624 = vlaneseq
        %v1625 = vshrl.u32 %v1624, 7
        %v1626 = vsub.s32 0, %v1625
        %v1627 = vrot.slane %v1622, %v1626
        %v1629 = vadd.f32 %v1620, %v1627
        %v1630 = vadd.f32 %v1621, %v1627
        %v1631 = vmul.f32 %v1629, 0.5
        %v1632 = vmul.f32 %v1630, 0.5
        %v1633 = vmul.f32 %v1629, 0.70710677
        %v1634 = vmul.f32 %v1630, 0.70710677
        %v1635 = verf.f32.pop %v1633
        %v1636 = verf.f32.pop %v1634
        %v1637 = vadd.f32 %v1635, 1.0
        %v1638 = vadd.f32 %v1636, 1.0
        %v1639 = vmul.f32 %v1631, %v1637
        %v1640 = vmul.f32 %v1632, %v1638
        %v1641 = vsel %vm1420, %v1639, 0.0
        %v1642 = vsel %vm1420, %v1640, 0.0
        %1643 = vst [vmem:[%s529] sm:$0xff] %v1641
        %1644 = vst [vmem:[%s529 + $0x8] sm:$0xff] %v1642
        %s1645 = sand.u32 %s384, 1
        %s1646 = scalar_lea.sflag [#allocation4], %s1645
        %s1647 = sand.u32 %s384, 1
        %s1648 = smul.addr %s1647, 16
        %s1649 = scalar_lea.vmem [#allocation3], %s1648
        // Predicated region
        $region85: #{tpu_custom_call.1} parent=83 // pred_check
          %p1650 = pneg %p394
        $region86: #{tpu_custom_call.1} parent=83 // pred_check_branch
          %1652 = sbr.rel (%p1650) target = $region88
        $region87: #{tpu_custom_call.1} parent=83 // pred_region
          %s1654 = ssub.s32 256, 256
          %1655 = vsyncadd %s1646, %s1654
          %s1656 = smul.addr %s30, 2
          %s1657 = smul.addr %s1656, 128
          %s1658 = scalar_lea.hbm %s16, %s1657
          %s1659 = sshll.u32 %s1649, 4
          %s1660 = int_to_ptr.vmem [resolvable:$true] %s1659
          %1665 = dma.vmem_to_hbm [thread:$0]  %s1660, 256, %s1658, %s1646, 128, 128, 8
        $region88: #{tpu_custom_call.1} parent=83 // pred_fallthru
          _
      $region84: #{tpu_custom_call.1} parent=5 // pred_fallthru
        _
      %p1666 = scmp.le.s32.totalorder 2, %s25
      // Predicated region
      $region89: #{tpu_custom_call.1} parent=5 // pred_check
        %p1667 = pneg %p1666
      $region90: #{tpu_custom_call.1} parent=5 // pred_check_branch
        %1669 = sbr.rel (%p1667) target = $region92
      $region91: #{tpu_custom_call.1} parent=5 // pred_region
        %s1670 = ssub.s32 %s25, 2
        // Predicated region
        $region93: #{tpu_custom_call.1} parent=91 // pred_check
          %p1671 = pneg %p400
        $region94: #{tpu_custom_call.1} parent=91 // pred_check_branch
          %1673 = sbr.rel (%p1671) target = $region96
        $region95: #{tpu_custom_call.1} parent=91 // pred_region
          %s1674 = sand.u32 %s385, 1
          %s1675 = scalar_lea.sflag [#allocation4], %s1674
          %s1676 = sand.u32 %s385, 1
          %s1677 = smul.addr %s1676, 16
          %s1678 = scalar_lea.vmem [#allocation3], %s1677
          %1679 = dma.done %s1675, 256
        $region96: #{tpu_custom_call.1} parent=91 // pred_fallthru
          _
      $region92: #{tpu_custom_call.1} parent=5 // pred_fallthru
        _
    $region6: #{tpu_custom_call.1} parent=1 // loop_footer
      %s29 = sadd.s32 1, %s25
    $region7: #{tpu_custom_call.1} parent=1 // loop_footer_branch
      %24 = sbr.rel target = $region3
    $region8: #{tpu_custom_call.1} parent=1 // loop_exit
      _
    %1680 = vsyncpa [#allocation4], 1
    %s1681 = scalar_lea.sflag [#allocation4], 1
    %1682 = vsyncpa %s1681, 1

</llo_original>
